<compile_context>
chip_gen: v7x
topology: tpu7x:2x2x1
jax: 0.10.0
libtpu: 0.0.40
codegen_flags: <defaults>
</compile_context>

<pallas_src>
import jax
import jax.numpy as jnp
from jax.experimental import pallas as pl
from jax.experimental.pallas import tpu as pltpu

KERNEL_SIZE = 7
PAD = KERNEL_SIZE // 2          # 3
KK = KERNEL_SIZE * KERNEL_SIZE  # 49


# -----------------------------------------------------------------------------
# Shared in-kernel helper: flat-padded 7x7 conv (2 ch -> 1 ch) + sigmoid.
# -----------------------------------------------------------------------------
def _conv_gate(avg, mx, w2_ref, col, vpad_ref, W, HW):
    """avg/mx: (1, HW) f32 reduced maps -> sigmoid(conv7x7([avg; mx])) (1, HW) f32.

    vpad_ref is a (2, L) f32 scratch holding flat, *vertically* zero-padded
    copies of the two maps: pixel (h, w) lives at flat offset EDGE + h*W + w
    with EDGE = PAD*W + PAD, so tap (kh, kw) of output pixel f is simply
    vpad[:, f + kh*W + kw].  Taps that would wrap horizontally across a row
    boundary are zeroed with per-kw column masks built from `col` (= w index).
    """
    f32 = jnp.float32
    EDGE = PAD * W + PAD

    # Refresh the zero border (cheap; megacore-safe since scratch is per-core)
    # and write the interiors.
    zer = jnp.zeros((2, EDGE), f32)
    vpad_ref[:, pl.ds(0, EDGE)] = zer
    vpad_ref[:, pl.ds(EDGE + HW, EDGE)] = zer
    vpad_ref[pl.ds(0, 1), pl.ds(EDGE, HW)] = avg
    vpad_ref[pl.ds(1, 1), pl.ds(EDGE, HW)] = mx

    # Per-kw horizontal wrap masks, built from the (1, HW) column-index vector.
    masks = {}
    for kw in range(KERNEL_SIZE):
        if kw == PAD:                       # center column never wraps
            continue
        lo = max(0, PAD - kw)
        hi = min(W, W + PAD - kw)
        if lo <= 0:
            mk = col < float(hi)
        elif hi >= W:
            mk = col >= float(lo)
        else:
            mk = (col >= float(lo)) & (col < float(hi))
        masks[kw] = mk.astype(f32)          # (1, HW)

    # 49 channel-paired taps; independent per-kw partials for ILP; one
    # cross-sublane add at the end.
    acc2 = None                             # (2, HW) f32
    for kw in range(KERNEL_SIZE):
        part2 = None
        for kh in range(KERNEL_SIZE):
            tap = vpad_ref[:, pl.ds(kh * W + kw, HW)]              # (2, HW)
            wcol = w2_ref[:, pl.ds(kh * KERNEL_SIZE + kw, 1)]      # (2, 1)
            contrib = tap * wcol
            part2 = contrib if part2 is None else part2 + contrib
        if kw != PAD:
            part2 = part2 * masks[kw]
        acc2 = part2 if acc2 is None else acc2 + part2
    conv = jnp.sum(acc2, axis=0, keepdims=True)                    # (1, HW)
    return jax.nn.sigmoid(conv)


# -----------------------------------------------------------------------------
# Fused single-pass kernel (whole (C, HW) block resident per batch element).
# -----------------------------------------------------------------------------
def _make_fused_kernel(C, H, W):
    HW = H * W
    n_full = C // 8
    rem = C % 8

    def kernel(w2_ref, col_ref, x_ref, o_ref, vpad_ref):
        # w2_ref  : VMEM (2, 49) f32   conv weight, channel-major
        # col_ref : VMEM (1, HW) f32   column index (w) of each flat pixel
        # x_ref   : VMEM (1, C, HW)    current batch element (lane-dense)
        # o_ref   : VMEM (1, C, HW)
        # vpad_ref: VMEM (2, L)  f32   flat vertically-padded {avg, max} maps
        f32 = jnp.float32

        # ---- channel reduce, sublane-dense (8, HW) slabs ----
        s = None
        m = None
        if n_full > 0:
            acc_s = x_ref[0, pl.ds(0, 8), :].astype(f32)           # (8, HW)
            acc_m = acc_s
            if 1 < n_full <= 32:
                for ci in range(1, n_full):
                    xc = x_ref[0, pl.ds(ci * 8, 8), :].astype(f32)
                    acc_s = acc_s + xc
                    acc_m = jnp.maximum(acc_m, xc)
            elif n_full > 32:
                def body(ci, carry):
                    cs, cm = carry
                    off = pl.multiple_of(ci * 8, 8)
                    xc = x_ref[0, pl.ds(off, 8), :].astype(f32)
                    return cs + xc, jnp.maximum(cm, xc)
                acc_s, acc_m = jax.lax.fori_loop(
                    1, n_full, body, (acc_s, acc_m), unroll=4)
            s = jnp.sum(acc_s, axis=0, keepdims=True)              # (1, HW) XLU
            m = jnp.max(acc_m, axis=0, keepdims=True)
        if rem > 0:
            xt = x_ref[0, pl.ds(n_full * 8, rem), :].astype(f32)   # (rem, HW)
            st = jnp.sum(xt, axis=0, keepdims=True)
            mt = jnp.max(xt, axis=0, keepdims=True)
            s = st if s is None else s + st
            m = mt if m is None else jnp.maximum(m, mt)
        avg = s * (1.0 / C)

        # ---- conv + sigmoid ----
        gate = _conv_gate(avg, m, w2_ref, col_ref[...], vpad_ref, W, HW)

        # ---- gating multiply, lane-dense store ----
        xv = x_ref[0]                                              # (C, HW)
        if xv.dtype == jnp.float32:
            o_ref[0] = (gate * xv).astype(o_ref.dtype)
        else:
            # Keep the dominant (C, HW) pass in the input dtype (bf16 VALU on
            # v6e/v7x); Mosaic legalizes it on v5e.
            o_ref[0] = (gate.astype(xv.dtype) * xv).astype(o_ref.dtype)

    return kernel


def _fused_call(x_flat, w2, col, N, C, H, W, L, vmem_limit):
    HW = H * W
    kernel = _make_fused_kernel(C, H, W)
    return pl.pallas_call(
        kernel,
        out_shape=jax.ShapeDtypeStruct((N, C, HW), x_flat.dtype),
        grid_spec=pltpu.PrefetchScalarGridSpec(
            num_scalar_prefetch=0,
            grid=(N,),
            in_specs=[
                pl.BlockSpec((2, KK), lambda n: (0, 0)),           # conv weight
                pl.BlockSpec((1, HW), lambda n: (0, 0)),           # column index
                pl.BlockSpec((1, C, HW), lambda n: (n, 0, 0)),     # x
            ],
            out_specs=pl.BlockSpec((1, C, HW), lambda n: (n, 0, 0)),
            scratch_shapes=[pltpu.VMEM((2, L), jnp.float32)],
        ),
        compiler_params=pltpu.CompilerParams(
            dimension_semantics=("parallel",),
            vmem_limit_bytes=int(vmem_limit)),
    )(w2, col, x_flat)


# -----------------------------------------------------------------------------
# Two-pass C-tiled fallback (large C*HW / small-VMEM generations like v7x).
# -----------------------------------------------------------------------------
def _make_gate_kernel(C, H, W, c_tile):
    HW = H * W
    n_sub = c_tile // 8
    has_tail = (C % c_tile) != 0            # last C tile carries OOB padding rows

    def kernel(w2_ref, col_ref, x_ref, gate_ref, vpad_ref, accs_ref, accm_ref):
        f32 = jnp.float32
        c_idx = pl.program_id(1)
        base = c_idx * c_tile

        # per-tile sublane-dense slab reduce; mask rows that fall outside C.
        s = None
        m = None
        for si in range(n_sub):
            xc = x_ref[0, pl.ds(si * 8, 8), :].astype(f32)         # (8, HW)
            if has_tail:
                row = (jax.lax.broadcasted_iota(jnp.int32, (8, HW), 0)
                       + (base + si * 8))
                valid = row < C
                xs = jnp.where(valid, xc, 0.0)
                xm = jnp.where(valid, xc, -jnp.inf)
            else:
                xs, xm = xc, xc
            s = xs if s is None else s + xs
            m = xm if m is None else jnp.maximum(m, xm)

        @pl.when(c_idx == 0)
        def _():
            accs_ref[...] = jnp.zeros_like(accs_ref)
            accm_ref[...] = jnp.full_like(accm_ref, -jnp.inf)

        accs_ref[...] = accs_ref[...] + s
        accm_ref[...] = jnp.maximum(accm_ref[...], m)

        @pl.when(c_idx == pl.num_programs(1) - 1)
        def _():
            avg = jnp.sum(accs_ref[...], axis=0, keepdims=True) * (1.0 / C)
            mx = jnp.max(accm_ref[...], axis=0, keepdims=True)
            gate_ref[0] = _conv_gate(avg, mx, w2_ref, col_ref[...],
                                     vpad_ref, W, HW)

    return kernel


def _apply_kernel(gate_ref, x_ref, o_ref):
    g = gate_ref[0]                                                # (1, HW) f32
    xv = x_ref[0]                                                  # (Ct, HW)
    if xv.dtype == jnp.float32:
        o_ref[0] = (g * xv).astype(o_ref.dtype)
    else:
        o_ref[0] = (g.astype(xv.dtype) * xv).astype(o_ref.dtype)


def _tiled_call(x_flat, w2, col, N, C, H, W, L, c_tile, usable):
    HW = H * W
    itemsize = x_flat.dtype.itemsize
    n_ct = pl.cdiv(C, c_tile)

    # ---- pass 1: C-tiled channel reduce + conv + sigmoid -> (N, 1, HW) gate ----
    gate_needed = (2 * c_tile * HW * itemsize + 2 * HW * 4 + 2 * 8 * 128 * 4
                   + 2 * HW * 4 + 2 * L * 4 + 2 * 8 * HW * 4 + (2 << 20))
    gate = pl.pallas_call(
        _make_gate_kernel(C, H, W, c_tile),
        out_shape=jax.ShapeDtypeStruct((N, 1, HW), jnp.float32),
        grid_spec=pltpu.PrefetchScalarGridSpec(
            num_scalar_prefetch=0,
            grid=(N, n_ct),
            in_specs=[
                pl.BlockSpec((2, KK), lambda n, c: (0, 0)),
                pl.BlockSpec((1, HW), lambda n, c: (0, 0)),
                pl.BlockSpec((1, c_tile, HW), lambda n, c: (n, c, 0)),
            ],
            out_specs=pl.BlockSpec((1, 1, HW), lambda n, c: (n, 0, 0)),
            scratch_shapes=[
                pltpu.VMEM((2, L), jnp.float32),
                pltpu.VMEM((8, HW), jnp.float32),
                pltpu.VMEM((8, HW), jnp.float32),
            ],
        ),
        compiler_params=pltpu.CompilerParams(
            dimension_semantics=("parallel", "arbitrary"),
            vmem_limit_bytes=int(min(max(gate_needed, 32 * 1024 * 1024), usable))),
    )(w2, col, x_flat)

    # ---- pass 2: out = gate * x, C-tiled fully-parallel elementwise ----
    apply_needed = 4 * c_tile * HW * itemsize + 2 * HW * 4 + (2 << 20)
    out_flat = pl.pallas_call(
        _apply_kernel,
        out_shape=jax.ShapeDtypeStruct((N, C, HW), x_flat.dtype),
        grid_spec=pltpu.PrefetchScalarGridSpec(
            num_scalar_prefetch=0,
            grid=(N, n_ct),
            in_specs=[
                pl.BlockSpec((1, 1, HW), lambda n, c: (n, 0, 0)),
                pl.BlockSpec((1, c_tile, HW), lambda n, c: (n, c, 0)),
            ],
            out_specs=pl.BlockSpec((1, c_tile, HW), lambda n, c: (n, c, 0)),
        ),
        compiler_params=pltpu.CompilerParams(
            dimension_semantics=("parallel", "parallel"),
            vmem_limit_bytes=int(min(max(apply_needed, 32 * 1024 * 1024), usable))),
    )(gate, x_flat)
    return out_flat


# -----------------------------------------------------------------------------
# Wrapper.
# -----------------------------------------------------------------------------
def _usable_vmem_bytes():
    """Generation-aware per-core VMEM budget (64 MiB on v7x, 128 MiB on v5e/v6e)."""
    try:
        cap = int(pltpu.get_tpu_info().vmem_capacity_bytes)
    except Exception:
        cap = 64 * 1024 * 1024          # conservative fallback (v7x per-core VMEM)
    return (cap * 3) // 4               # headroom for compiler-internal scratch


def _pick_c_tile(C, HW, itemsize, usable):
    # pass 2 (apply) is the larger consumer: ~4 * Ct * HW * itemsize double-buffered.
    budget = usable - (4 << 20)
    ct = budget // (4 * HW * itemsize)
    ct = max(8, (ct // 8) * 8)
    c_ceil = ((C + 7) // 8) * 8
    # TODO(synk): also tile H*W (with a PAD-row halo) if even an 8-channel tile
    #             exceeds VMEM (pathologically large spatial extents).
    return int(min(ct, c_ceil, 256))


def spatial_attention(x, conv_weight, *, force_c_tile=None):
    """x: (N, C, H, W); conv_weight: (1, 2, 7, 7) as in nn.Conv2d(2, 1, 7, bias=False).

    force_c_tile: if set (positive multiple of 8), force the two-pass C-tiled
    path with that channel-tile size (testing / very large shapes).
    """
    N, C, H, W = x.shape
    HW = H * W
    EDGE = PAD * W + PAD
    L = HW + 2 * EDGE
    itemsize = x.dtype.itemsize

    w2 = conv_weight.reshape(2, KK).astype(jnp.float32)            # (2, 49)
    col = (jnp.arange(HW, dtype=jnp.int32) % W).astype(jnp.float32).reshape(1, HW)
    x_flat = x.reshape(N, C, HW)

    usable = _usable_vmem_bytes()
    fused_needed = (4 * C * HW * itemsize        # x + out, double buffered
                    + 2 * HW * 4                 # column-index vector
                    + 2 * 8 * 128 * 4            # weight tile (padded)
                    + 2 * L * 4                  # vpad scratch
                    + (2 << 20))                 # headroom

    if force_c_tile is None and fused_needed <= usable:
        vmem_limit = min(max(fused_needed, 32 * 1024 * 1024), usable)
        out_flat = _fused_call(x_flat, w2, col, N, C, H, W, L, vmem_limit)
    else:
        if force_c_tile is not None:
            if force_c_tile % 8 != 0 or force_c_tile <= 0:
                raise ValueError("force_c_tile must be a positive multiple of 8")
            c_tile = int(force_c_tile)
        else:
            c_tile = _pick_c_tile(C, HW, itemsize, usable)
        out_flat = _tiled_call(x_flat, w2, col, N, C, H, W, L, c_tile, usable)
    return out_flat.reshape(N, C, H, W)


# -----------------------------------------------------------------------------
# Pure-JAX reference + self-test.
# -----------------------------------------------------------------------------
def _reference(x, conv_weight):
    avg = jnp.mean(x, axis=1, keepdims=True)
    mx = jnp.max(x, axis=1, keepdims=True)
    feat = jnp.concatenate([avg, mx], axis=1)                      # (N,2,H,W)
    conv = jax.lax.conv_general_dilated(
        feat, conv_weight,
        window_strides=(1, 1),
        padding=[(PAD, PAD), (PAD, PAD)],
        dimension_numbers=("NCHW", "OIHW", "NCHW"))                # (N,1,H,W)
    return jax.nn.sigmoid(conv) * x


if __name__ == "__main__":
    key = jax.random.PRNGKey(0)
    kx1, kx2, kx3, kw = jax.random.split(key, 4)

    # Deterministic synthetic conv weight, matches nn.Conv2d(2, 1, 7, bias=False).
    conv_weight = 0.1 * jax.random.normal(
        kw, (1, 2, KERNEL_SIZE, KERNEL_SIZE), dtype=jnp.float32)

    # 1) fused single-pass path (small block fits VMEM)
    x1 = jax.random.normal(kx1, (2, 4, 16, 16), dtype=jnp.float32)
    out1 = jax.block_until_ready(spatial_attention(x1, conv_weight))
    err1 = float(jnp.max(jnp.abs(out1 - _reference(x1, conv_weight))))
    assert out1.shape == x1.shape, "bad output shape (fused)"
    assert err1 < 1e-3, f"fused path max abs err = {err1}"

    # 2) forced two-pass C-tiled path, evenly divisible C
    x2 = jax.random.normal(kx2, (2, 16, 16, 16), dtype=jnp.float32)
    out2 = jax.block_until_ready(
        spatial_attention(x2, conv_weight, force_c_tile=8))
    err2 = float(jnp.max(jnp.abs(out2 - _reference(x2, conv_weight))))
    assert err2 < 1e-3, f"tiled path max abs err = {err2}"

    # 3) forced C-tiled path with a ragged channel tail (exercises the row mask)
    x3 = jax.random.normal(kx3, (1, 12, 16, 16), dtype=jnp.float32)
    out3 = jax.block_until_ready(
        spatial_attention(x3, conv_weight, force_c_tile=8))
    err3 = float(jnp.max(jnp.abs(out3 - _reference(x3, conv_weight))))
    assert err3 < 1e-3, f"tiled-tail path max abs err = {err3}"

    print("KERNEL_OK")
</pallas_src>

<mosaic_0001>
module attributes {stable_mosaic.version = 11 : i64} {
  func.func @kernel(%arg0: i32, %arg1: memref<2x49xf32, #tpu.memory_space<vmem>>, %arg2: memref<1x256xf32, #tpu.memory_space<vmem>>, %arg3: memref<1x4x256xf32, #tpu.memory_space<vmem>>, %arg4: memref<1x4x256xf32, #tpu.memory_space<vmem>>, %arg5: memref<2x358xf32, #tpu.memory_space<vmem>>) attributes {dimension_semantics = [#tpu.dimension_semantics<parallel>], iteration_bounds = array<i64: 2>, scalar_prefetch = 0 : i64, scratch_operands = 1 : i64, tpu.core_type = #tpu.core_type<tc>, window_params = [{pipeline_mode = #tpu.pipeline_mode<synchronous>, transform_indices = @transform_0, window_bounds = array<i64: 2, 49>}, {pipeline_mode = #tpu.pipeline_mode<synchronous>, transform_indices = @transform_1, window_bounds = array<i64: 1, 256>}, {transform_indices = @transform_2, window_bounds = array<i64: 1, 4, 256>}, {transform_indices = @transform_3, window_bounds = array<i64: 1, 4, 256>}]} {
    %c0 = arith.constant 0 : index
    %c0_0 = arith.constant 0 : index
    %c0_1 = arith.constant 0 : index
    %0 = vector.load %arg3[%c0, %c0_0, %c0_1] : memref<1x4x256xf32, #tpu.memory_space<vmem>>, vector<1x4x256xf32>
    %1 = vector.shape_cast %0 : vector<1x4x256xf32> to vector<4x256xf32>
    %cst = arith.constant dense<0.000000e+00> : vector<256xf32>
    %2 = vector.multi_reduction <add>, %1, %cst [0] : vector<4x256xf32> to vector<256xf32>
    %3 = vector.shape_cast %2 : vector<256xf32> to vector<1x256xf32>
    %cst_2 = arith.constant dense<0xFF800000> : vector<256xf32>
    %4 = vector.multi_reduction <maximumf>, %1, %cst_2 [0] : vector<4x256xf32> to vector<256xf32>
    %5 = vector.shape_cast %4 : vector<256xf32> to vector<1x256xf32>
    %cst_3 = arith.constant 2.500000e-01 : f32
    %6 = vector.broadcast %cst_3 : f32 to vector<1x256xf32>
    %7 = arith.mulf %3, %6 : vector<1x256xf32>
    %c0_4 = arith.constant 0 : index
    %c0_5 = arith.constant 0 : index
    %8 = vector.load %arg2[%c0_4, %c0_5] : memref<1x256xf32, #tpu.memory_space<vmem>>, vector<1x256xf32>
    %cst_6 = arith.constant 0.000000e+00 : f32
    %9 = vector.broadcast %cst_6 : f32 to vector<2x51xf32>
    %c0_7 = arith.constant 0 : index
    %c0_8 = arith.constant 0 : index
    %10 = vector.load %arg5[%c0_7, %c0_8] : memref<2x358xf32, #tpu.memory_space<vmem>>, vector<2x51xf32>
    tpu.vector_store %arg5[%c0_7, %c0_8], %9 {strides = array<i32>} : memref<2x358xf32, #tpu.memory_space<vmem>>, vector<2x51xf32>,
    %c0_9 = arith.constant 0 : index
    %c307 = arith.constant 307 : index
    %11 = vector.load %arg5[%c0_9, %c307] : memref<2x358xf32, #tpu.memory_space<vmem>>, vector<2x51xf32>
    tpu.vector_store %arg5[%c0_9, %c307], %9 {strides = array<i32>} : memref<2x358xf32, #tpu.memory_space<vmem>>, vector<2x51xf32>,
    %c0_10 = arith.constant 0 : index
    %c51 = arith.constant 51 : index
    %12 = vector.load %arg5[%c0_10, %c51] : memref<2x358xf32, #tpu.memory_space<vmem>>, vector<1x256xf32>
    tpu.vector_store %arg5[%c0_10, %c51], %7 {strides = array<i32>} : memref<2x358xf32, #tpu.memory_space<vmem>>, vector<1x256xf32>,
    %c1 = arith.constant 1 : index
    %c51_11 = arith.constant 51 : index
    %13 = vector.load %arg5[%c1, %c51_11] : memref<2x358xf32, #tpu.memory_space<vmem>>, vector<1x256xf32>
    tpu.vector_store %arg5[%c1, %c51_11], %5 {strides = array<i32>} : memref<2x358xf32, #tpu.memory_space<vmem>>, vector<1x256xf32>,
    %cst_12 = arith.constant 3.000000e+00 : f32
    %14 = vector.broadcast %cst_12 : f32 to vector<1x256xf32>
    %15 = arith.cmpf oge, %8, %14 : vector<1x256xf32>
    %16 = arith.extui %15 : vector<1x256xi1> to vector<1x256xi32>
    %17 = arith.sitofp %16 : vector<1x256xi32> to vector<1x256xf32>
    %cst_13 = arith.constant 2.000000e+00 : f32
    %18 = vector.broadcast %cst_13 : f32 to vector<1x256xf32>
    %19 = arith.cmpf oge, %8, %18 : vector<1x256xf32>
    %20 = arith.extui %19 : vector<1x256xi1> to vector<1x256xi32>
    %21 = arith.sitofp %20 : vector<1x256xi32> to vector<1x256xf32>
    %cst_14 = arith.constant 1.000000e+00 : f32
    %22 = vector.broadcast %cst_14 : f32 to vector<1x256xf32>
    %23 = arith.cmpf oge, %8, %22 : vector<1x256xf32>
    %24 = arith.extui %23 : vector<1x256xi1> to vector<1x256xi32>
    %25 = arith.sitofp %24 : vector<1x256xi32> to vector<1x256xf32>
    %cst_15 = arith.constant 1.500000e+01 : f32
    %26 = vector.broadcast %cst_15 : f32 to vector<1x256xf32>
    %27 = arith.cmpf olt, %8, %26 : vector<1x256xf32>
    %28 = arith.extui %27 : vector<1x256xi1> to vector<1x256xi32>
    %29 = arith.sitofp %28 : vector<1x256xi32> to vector<1x256xf32>
    %cst_16 = arith.constant 1.400000e+01 : f32
    %30 = vector.broadcast %cst_16 : f32 to vector<1x256xf32>
    %31 = arith.cmpf olt, %8, %30 : vector<1x256xf32>
    %32 = arith.extui %31 : vector<1x256xi1> to vector<1x256xi32>
    %33 = arith.sitofp %32 : vector<1x256xi32> to vector<1x256xf32>
    %cst_17 = arith.constant 1.300000e+01 : f32
    %34 = vector.broadcast %cst_17 : f32 to vector<1x256xf32>
    %35 = arith.cmpf olt, %8, %34 : vector<1x256xf32>
    %36 = arith.extui %35 : vector<1x256xi1> to vector<1x256xi32>
    %37 = arith.sitofp %36 : vector<1x256xi32> to vector<1x256xf32>
    %c0_18 = arith.constant 0 : index
    %c0_19 = arith.constant 0 : index
    %38 = vector.load %arg5[%c0_18, %c0_19] : memref<2x358xf32, #tpu.memory_space<vmem>>, vector<2x256xf32>
    %c0_20 = arith.constant 0 : index
    %c0_21 = arith.constant 0 : index
    %39 = vector.load %arg1[%c0_20, %c0_21] : memref<2x49xf32, #tpu.memory_space<vmem>>, vector<2x1xf32>
    %40 = vector.broadcast %39 : vector<2x1xf32> to vector<2x256xf32>
    %41 = arith.mulf %38, %40 : vector<2x256xf32>
    %c0_22 = arith.constant 0 : index
    %c16 = arith.constant 16 : index
    %42 = vector.load %arg5[%c0_22, %c16] : memref<2x358xf32, #tpu.memory_space<vmem>>, vector<2x256xf32>
    %c0_23 = arith.constant 0 : index
    %c7 = arith.constant 7 : index
    %43 = vector.load %arg1[%c0_23, %c7] : memref<2x49xf32, #tpu.memory_space<vmem>>, vector<2x1xf32>
    %44 = vector.broadcast %43 : vector<2x1xf32> to vector<2x256xf32>
    %45 = arith.mulf %42, %44 : vector<2x256xf32>
    %46 = arith.addf %41, %45 : vector<2x256xf32>
    %c0_24 = arith.constant 0 : index
    %c32 = arith.constant 32 : index
    %47 = vector.load %arg5[%c0_24, %c32] : memref<2x358xf32, #tpu.memory_space<vmem>>, vector<2x256xf32>
    %c0_25 = arith.constant 0 : index
    %c14 = arith.constant 14 : index
    %48 = vector.load %arg1[%c0_25, %c14] : memref<2x49xf32, #tpu.memory_space<vmem>>, vector<2x1xf32>
    %49 = vector.broadcast %48 : vector<2x1xf32> to vector<2x256xf32>
    %50 = arith.mulf %47, %49 : vector<2x256xf32>
    %51 = arith.addf %46, %50 : vector<2x256xf32>
    %c0_26 = arith.constant 0 : index
    %c48 = arith.constant 48 : index
    %52 = vector.load %arg5[%c0_26, %c48] : memref<2x358xf32, #tpu.memory_space<vmem>>, vector<2x256xf32>
    %c0_27 = arith.constant 0 : index
    %c21 = arith.constant 21 : index
    %53 = vector.load %arg1[%c0_27, %c21] : memref<2x49xf32, #tpu.memory_space<vmem>>, vector<2x1xf32>
    %54 = vector.broadcast %53 : vector<2x1xf32> to vector<2x256xf32>
    %55 = arith.mulf %52, %54 : vector<2x256xf32>
    %56 = arith.addf %51, %55 : vector<2x256xf32>
    %c0_28 = arith.constant 0 : index
    %c64 = arith.constant 64 : index
    %57 = vector.load %arg5[%c0_28, %c64] : memref<2x358xf32, #tpu.memory_space<vmem>>, vector<2x256xf32>
    %c0_29 = arith.constant 0 : index
    %c28 = arith.constant 28 : index
    %58 = vector.load %arg1[%c0_29, %c28] : memref<2x49xf32, #tpu.memory_space<vmem>>, vector<2x1xf32>
    %59 = vector.broadcast %58 : vector<2x1xf32> to vector<2x256xf32>
    %60 = arith.mulf %57, %59 : vector<2x256xf32>
    %61 = arith.addf %56, %60 : vector<2x256xf32>
    %c0_30 = arith.constant 0 : index
    %c80 = arith.constant 80 : index
    %62 = vector.load %arg5[%c0_30, %c80] : memref<2x358xf32, #tpu.memory_space<vmem>>, vector<2x256xf32>
    %c0_31 = arith.constant 0 : index
    %c35 = arith.constant 35 : index
    %63 = vector.load %arg1[%c0_31, %c35] : memref<2x49xf32, #tpu.memory_space<vmem>>, vector<2x1xf32>
    %64 = vector.broadcast %63 : vector<2x1xf32> to vector<2x256xf32>
    %65 = arith.mulf %62, %64 : vector<2x256xf32>
    %66 = arith.addf %61, %65 : vector<2x256xf32>
    %c0_32 = arith.constant 0 : index
    %c96 = arith.constant 96 : index
    %67 = vector.load %arg5[%c0_32, %c96] : memref<2x358xf32, #tpu.memory_space<vmem>>, vector<2x256xf32>
    %c0_33 = arith.constant 0 : index
    %c42 = arith.constant 42 : index
    %68 = vector.load %arg1[%c0_33, %c42] : memref<2x49xf32, #tpu.memory_space<vmem>>, vector<2x1xf32>
    %69 = vector.broadcast %68 : vector<2x1xf32> to vector<2x256xf32>
    %70 = arith.mulf %67, %69 : vector<2x256xf32>
    %71 = arith.addf %66, %70 : vector<2x256xf32>
    %72 = vector.broadcast %17 : vector<1x256xf32> to vector<2x256xf32>
    %73 = arith.mulf %71, %72 : vector<2x256xf32>
    %c0_34 = arith.constant 0 : index
    %c1_35 = arith.constant 1 : index
    %74 = vector.load %arg5[%c0_34, %c1_35] : memref<2x358xf32, #tpu.memory_space<vmem>>, vector<2x256xf32>
    %c0_36 = arith.constant 0 : index
    %c1_37 = arith.constant 1 : index
    %75 = vector.load %arg1[%c0_36, %c1_37] : memref<2x49xf32, #tpu.memory_space<vmem>>, vector<2x1xf32>
    %76 = vector.broadcast %75 : vector<2x1xf32> to vector<2x256xf32>
    %77 = arith.mulf %74, %76 : vector<2x256xf32>
    %c0_38 = arith.constant 0 : index
    %c17 = arith.constant 17 : index
    %78 = vector.load %arg5[%c0_38, %c17] : memref<2x358xf32, #tpu.memory_space<vmem>>, vector<2x256xf32>
    %c0_39 = arith.constant 0 : index
    %c8 = arith.constant 8 : index
    %79 = vector.load %arg1[%c0_39, %c8] : memref<2x49xf32, #tpu.memory_space<vmem>>, vector<2x1xf32>
    %80 = vector.broadcast %79 : vector<2x1xf32> to vector<2x256xf32>
    %81 = arith.mulf %78, %80 : vector<2x256xf32>
    %82 = arith.addf %77, %81 : vector<2x256xf32>
    %c0_40 = arith.constant 0 : index
    %c33 = arith.constant 33 : index
    %83 = vector.load %arg5[%c0_40, %c33] : memref<2x358xf32, #tpu.memory_space<vmem>>, vector<2x256xf32>
    %c0_41 = arith.constant 0 : index
    %c15 = arith.constant 15 : index
    %84 = vector.load %arg1[%c0_41, %c15] : memref<2x49xf32, #tpu.memory_space<vmem>>, vector<2x1xf32>
    %85 = vector.broadcast %84 : vector<2x1xf32> to vector<2x256xf32>
    %86 = arith.mulf %83, %85 : vector<2x256xf32>
    %87 = arith.addf %82, %86 : vector<2x256xf32>
    %c0_42 = arith.constant 0 : index
    %c49 = arith.constant 49 : index
    %88 = vector.load %arg5[%c0_42, %c49] : memref<2x358xf32, #tpu.memory_space<vmem>>, vector<2x256xf32>
    %c0_43 = arith.constant 0 : index
    %c22 = arith.constant 22 : index
    %89 = vector.load %arg1[%c0_43, %c22] : memref<2x49xf32, #tpu.memory_space<vmem>>, vector<2x1xf32>
    %90 = vector.broadcast %89 : vector<2x1xf32> to vector<2x256xf32>
    %91 = arith.mulf %88, %90 : vector<2x256xf32>
    %92 = arith.addf %87, %91 : vector<2x256xf32>
    %c0_44 = arith.constant 0 : index
    %c65 = arith.constant 65 : index
    %93 = vector.load %arg5[%c0_44, %c65] : memref<2x358xf32, #tpu.memory_space<vmem>>, vector<2x256xf32>
    %c0_45 = arith.constant 0 : index
    %c29 = arith.constant 29 : index
    %94 = vector.load %arg1[%c0_45, %c29] : memref<2x49xf32, #tpu.memory_space<vmem>>, vector<2x1xf32>
    %95 = vector.broadcast %94 : vector<2x1xf32> to vector<2x256xf32>
    %96 = arith.mulf %93, %95 : vector<2x256xf32>
    %97 = arith.addf %92, %96 : vector<2x256xf32>
    %c0_46 = arith.constant 0 : index
    %c81 = arith.constant 81 : index
    %98 = vector.load %arg5[%c0_46, %c81] : memref<2x358xf32, #tpu.memory_space<vmem>>, vector<2x256xf32>
    %c0_47 = arith.constant 0 : index
    %c36 = arith.constant 36 : index
    %99 = vector.load %arg1[%c0_47, %c36] : memref<2x49xf32, #tpu.memory_space<vmem>>, vector<2x1xf32>
    %100 = vector.broadcast %99 : vector<2x1xf32> to vector<2x256xf32>
    %101 = arith.mulf %98, %100 : vector<2x256xf32>
    %102 = arith.addf %97, %101 : vector<2x256xf32>
    %c0_48 = arith.constant 0 : index
    %c97 = arith.constant 97 : index
    %103 = vector.load %arg5[%c0_48, %c97] : memref<2x358xf32, #tpu.memory_space<vmem>>, vector<2x256xf32>
    %c0_49 = arith.constant 0 : index
    %c43 = arith.constant 43 : index
    %104 = vector.load %arg1[%c0_49, %c43] : memref<2x49xf32, #tpu.memory_space<vmem>>, vector<2x1xf32>
    %105 = vector.broadcast %104 : vector<2x1xf32> to vector<2x256xf32>
    %106 = arith.mulf %103, %105 : vector<2x256xf32>
    %107 = arith.addf %102, %106 : vector<2x256xf32>
    %108 = vector.broadcast %21 : vector<1x256xf32> to vector<2x256xf32>
    %109 = arith.mulf %107, %108 : vector<2x256xf32>
    %110 = arith.addf %73, %109 : vector<2x256xf32>
    %c0_50 = arith.constant 0 : index
    %c2 = arith.constant 2 : index
    %111 = vector.load %arg5[%c0_50, %c2] : memref<2x358xf32, #tpu.memory_space<vmem>>, vector<2x256xf32>
    %c0_51 = arith.constant 0 : index
    %c2_52 = arith.constant 2 : index
    %112 = vector.load %arg1[%c0_51, %c2_52] : memref<2x49xf32, #tpu.memory_space<vmem>>, vector<2x1xf32>
    %113 = vector.broadcast %112 : vector<2x1xf32> to vector<2x256xf32>
    %114 = arith.mulf %111, %113 : vector<2x256xf32>
    %c0_53 = arith.constant 0 : index
    %c18 = arith.constant 18 : index
    %115 = vector.load %arg5[%c0_53, %c18] : memref<2x358xf32, #tpu.memory_space<vmem>>, vector<2x256xf32>
    %c0_54 = arith.constant 0 : index
    %c9 = arith.constant 9 : index
    %116 = vector.load %arg1[%c0_54, %c9] : memref<2x49xf32, #tpu.memory_space<vmem>>, vector<2x1xf32>
    %117 = vector.broadcast %116 : vector<2x1xf32> to vector<2x256xf32>
    %118 = arith.mulf %115, %117 : vector<2x256xf32>
    %119 = arith.addf %114, %118 : vector<2x256xf32>
    %c0_55 = arith.constant 0 : index
    %c34 = arith.constant 34 : index
    %120 = vector.load %arg5[%c0_55, %c34] : memref<2x358xf32, #tpu.memory_space<vmem>>, vector<2x256xf32>
    %c0_56 = arith.constant 0 : index
    %c16_57 = arith.constant 16 : index
    %121 = vector.load %arg1[%c0_56, %c16_57] : memref<2x49xf32, #tpu.memory_space<vmem>>, vector<2x1xf32>
    %122 = vector.broadcast %121 : vector<2x1xf32> to vector<2x256xf32>
    %123 = arith.mulf %120, %122 : vector<2x256xf32>
    %124 = arith.addf %119, %123 : vector<2x256xf32>
    %c0_58 = arith.constant 0 : index
    %c50 = arith.constant 50 : index
    %125 = vector.load %arg5[%c0_58, %c50] : memref<2x358xf32, #tpu.memory_space<vmem>>, vector<2x256xf32>
    %c0_59 = arith.constant 0 : index
    %c23 = arith.constant 23 : index
    %126 = vector.load %arg1[%c0_59, %c23] : memref<2x49xf32, #tpu.memory_space<vmem>>, vector<2x1xf32>
    %127 = vector.broadcast %126 : vector<2x1xf32> to vector<2x256xf32>
    %128 = arith.mulf %125, %127 : vector<2x256xf32>
    %129 = arith.addf %124, %128 : vector<2x256xf32>
    %c0_60 = arith.constant 0 : index
    %c66 = arith.constant 66 : index
    %130 = vector.load %arg5[%c0_60, %c66] : memref<2x358xf32, #tpu.memory_space<vmem>>, vector<2x256xf32>
    %c0_61 = arith.constant 0 : index
    %c30 = arith.constant 30 : index
    %131 = vector.load %arg1[%c0_61, %c30] : memref<2x49xf32, #tpu.memory_space<vmem>>, vector<2x1xf32>
    %132 = vector.broadcast %131 : vector<2x1xf32> to vector<2x256xf32>
    %133 = arith.mulf %130, %132 : vector<2x256xf32>
    %134 = arith.addf %129, %133 : vector<2x256xf32>
    %c0_62 = arith.constant 0 : index
    %c82 = arith.constant 82 : index
    %135 = vector.load %arg5[%c0_62, %c82] : memref<2x358xf32, #tpu.memory_space<vmem>>, vector<2x256xf32>
    %c0_63 = arith.constant 0 : index
    %c37 = arith.constant 37 : index
    %136 = vector.load %arg1[%c0_63, %c37] : memref<2x49xf32, #tpu.memory_space<vmem>>, vector<2x1xf32>
    %137 = vector.broadcast %136 : vector<2x1xf32> to vector<2x256xf32>
    %138 = arith.mulf %135, %137 : vector<2x256xf32>
    %139 = arith.addf %134, %138 : vector<2x256xf32>
    %c0_64 = arith.constant 0 : index
    %c98 = arith.constant 98 : index
    %140 = vector.load %arg5[%c0_64, %c98] : memref<2x358xf32, #tpu.memory_space<vmem>>, vector<2x256xf32>
    %c0_65 = arith.constant 0 : index
    %c44 = arith.constant 44 : index
    %141 = vector.load %arg1[%c0_65, %c44] : memref<2x49xf32, #tpu.memory_space<vmem>>, vector<2x1xf32>
    %142 = vector.broadcast %141 : vector<2x1xf32> to vector<2x256xf32>
    %143 = arith.mulf %140, %142 : vector<2x256xf32>
    %144 = arith.addf %139, %143 : vector<2x256xf32>
    %145 = vector.broadcast %25 : vector<1x256xf32> to vector<2x256xf32>
    %146 = arith.mulf %144, %145 : vector<2x256xf32>
    %147 = arith.addf %110, %146 : vector<2x256xf32>
    %c0_66 = arith.constant 0 : index
    %c3 = arith.constant 3 : index
    %148 = vector.load %arg5[%c0_66, %c3] : memref<2x358xf32, #tpu.memory_space<vmem>>, vector<2x256xf32>
    %c0_67 = arith.constant 0 : index
    %c3_68 = arith.constant 3 : index
    %149 = vector.load %arg1[%c0_67, %c3_68] : memref<2x49xf32, #tpu.memory_space<vmem>>, vector<2x1xf32>
    %150 = vector.broadcast %149 : vector<2x1xf32> to vector<2x256xf32>
    %151 = arith.mulf %148, %150 : vector<2x256xf32>
    %c0_69 = arith.constant 0 : index
    %c19 = arith.constant 19 : index
    %152 = vector.load %arg5[%c0_69, %c19] : memref<2x358xf32, #tpu.memory_space<vmem>>, vector<2x256xf32>
    %c0_70 = arith.constant 0 : index
    %c10 = arith.constant 10 : index
    %153 = vector.load %arg1[%c0_70, %c10] : memref<2x49xf32, #tpu.memory_space<vmem>>, vector<2x1xf32>
    %154 = vector.broadcast %153 : vector<2x1xf32> to vector<2x256xf32>
    %155 = arith.mulf %152, %154 : vector<2x256xf32>
    %156 = arith.addf %151, %155 : vector<2x256xf32>
    %c0_71 = arith.constant 0 : index
    %c35_72 = arith.constant 35 : index
    %157 = vector.load %arg5[%c0_71, %c35_72] : memref<2x358xf32, #tpu.memory_space<vmem>>, vector<2x256xf32>
    %c0_73 = arith.constant 0 : index
    %c17_74 = arith.constant 17 : index
    %158 = vector.load %arg1[%c0_73, %c17_74] : memref<2x49xf32, #tpu.memory_space<vmem>>, vector<2x1xf32>
    %159 = vector.broadcast %158 : vector<2x1xf32> to vector<2x256xf32>
    %160 = arith.mulf %157, %159 : vector<2x256xf32>
    %161 = arith.addf %156, %160 : vector<2x256xf32>
    %c0_75 = arith.constant 0 : index
    %c51_76 = arith.constant 51 : index
    %162 = vector.load %arg5[%c0_75, %c51_76] : memref<2x358xf32, #tpu.memory_space<vmem>>, vector<2x256xf32>
    %c0_77 = arith.constant 0 : index
    %c24 = arith.constant 24 : index
    %163 = vector.load %arg1[%c0_77, %c24] : memref<2x49xf32, #tpu.memory_space<vmem>>, vector<2x1xf32>
    %164 = vector.broadcast %163 : vector<2x1xf32> to vector<2x256xf32>
    %165 = arith.mulf %162, %164 : vector<2x256xf32>
    %166 = arith.addf %161, %165 : vector<2x256xf32>
    %c0_78 = arith.constant 0 : index
    %c67 = arith.constant 67 : index
    %167 = vector.load %arg5[%c0_78, %c67] : memref<2x358xf32, #tpu.memory_space<vmem>>, vector<2x256xf32>
    %c0_79 = arith.constant 0 : index
    %c31 = arith.constant 31 : index
    %168 = vector.load %arg1[%c0_79, %c31] : memref<2x49xf32, #tpu.memory_space<vmem>>, vector<2x1xf32>
    %169 = vector.broadcast %168 : vector<2x1xf32> to vector<2x256xf32>
    %170 = arith.mulf %167, %169 : vector<2x256xf32>
    %171 = arith.addf %166, %170 : vector<2x256xf32>
    %c0_80 = arith.constant 0 : index
    %c83 = arith.constant 83 : index
    %172 = vector.load %arg5[%c0_80, %c83] : memref<2x358xf32, #tpu.memory_space<vmem>>, vector<2x256xf32>
    %c0_81 = arith.constant 0 : index
    %c38 = arith.constant 38 : index
    %173 = vector.load %arg1[%c0_81, %c38] : memref<2x49xf32, #tpu.memory_space<vmem>>, vector<2x1xf32>
    %174 = vector.broadcast %173 : vector<2x1xf32> to vector<2x256xf32>
    %175 = arith.mulf %172, %174 : vector<2x256xf32>
    %176 = arith.addf %171, %175 : vector<2x256xf32>
    %c0_82 = arith.constant 0 : index
    %c99 = arith.constant 99 : index
    %177 = vector.load %arg5[%c0_82, %c99] : memref<2x358xf32, #tpu.memory_space<vmem>>, vector<2x256xf32>
    %c0_83 = arith.constant 0 : index
    %c45 = arith.constant 45 : index
    %178 = vector.load %arg1[%c0_83, %c45] : memref<2x49xf32, #tpu.memory_space<vmem>>, vector<2x1xf32>
    %179 = vector.broadcast %178 : vector<2x1xf32> to vector<2x256xf32>
    %180 = arith.mulf %177, %179 : vector<2x256xf32>
    %181 = arith.addf %176, %180 : vector<2x256xf32>
    %182 = arith.addf %147, %181 : vector<2x256xf32>
    %c0_84 = arith.constant 0 : index
    %c4 = arith.constant 4 : index
    %183 = vector.load %arg5[%c0_84, %c4] : memref<2x358xf32, #tpu.memory_space<vmem>>, vector<2x256xf32>
    %c0_85 = arith.constant 0 : index
    %c4_86 = arith.constant 4 : index
    %184 = vector.load %arg1[%c0_85, %c4_86] : memref<2x49xf32, #tpu.memory_space<vmem>>, vector<2x1xf32>
    %185 = vector.broadcast %184 : vector<2x1xf32> to vector<2x256xf32>
    %186 = arith.mulf %183, %185 : vector<2x256xf32>
    %c0_87 = arith.constant 0 : index
    %c20 = arith.constant 20 : index
    %187 = vector.load %arg5[%c0_87, %c20] : memref<2x358xf32, #tpu.memory_space<vmem>>, vector<2x256xf32>
    %c0_88 = arith.constant 0 : index
    %c11 = arith.constant 11 : index
    %188 = vector.load %arg1[%c0_88, %c11] : memref<2x49xf32, #tpu.memory_space<vmem>>, vector<2x1xf32>
    %189 = vector.broadcast %188 : vector<2x1xf32> to vector<2x256xf32>
    %190 = arith.mulf %187, %189 : vector<2x256xf32>
    %191 = arith.addf %186, %190 : vector<2x256xf32>
    %c0_89 = arith.constant 0 : index
    %c36_90 = arith.constant 36 : index
    %192 = vector.load %arg5[%c0_89, %c36_90] : memref<2x358xf32, #tpu.memory_space<vmem>>, vector<2x256xf32>
    %c0_91 = arith.constant 0 : index
    %c18_92 = arith.constant 18 : index
    %193 = vector.load %arg1[%c0_91, %c18_92] : memref<2x49xf32, #tpu.memory_space<vmem>>, vector<2x1xf32>
    %194 = vector.broadcast %193 : vector<2x1xf32> to vector<2x256xf32>
    %195 = arith.mulf %192, %194 : vector<2x256xf32>
    %196 = arith.addf %191, %195 : vector<2x256xf32>
    %c0_93 = arith.constant 0 : index
    %c52 = arith.constant 52 : index
    %197 = vector.load %arg5[%c0_93, %c52] : memref<2x358xf32, #tpu.memory_space<vmem>>, vector<2x256xf32>
    %c0_94 = arith.constant 0 : index
    %c25 = arith.constant 25 : index
    %198 = vector.load %arg1[%c0_94, %c25] : memref<2x49xf32, #tpu.memory_space<vmem>>, vector<2x1xf32>
    %199 = vector.broadcast %198 : vector<2x1xf32> to vector<2x256xf32>
    %200 = arith.mulf %197, %199 : vector<2x256xf32>
    %201 = arith.addf %196, %200 : vector<2x256xf32>
    %c0_95 = arith.constant 0 : index
    %c68 = arith.constant 68 : index
    %202 = vector.load %arg5[%c0_95, %c68] : memref<2x358xf32, #tpu.memory_space<vmem>>, vector<2x256xf32>
    %c0_96 = arith.constant 0 : index
    %c32_97 = arith.constant 32 : index
    %203 = vector.load %arg1[%c0_96, %c32_97] : memref<2x49xf32, #tpu.memory_space<vmem>>, vector<2x1xf32>
    %204 = vector.broadcast %203 : vector<2x1xf32> to vector<2x256xf32>
    %205 = arith.mulf %202, %204 : vector<2x256xf32>
    %206 = arith.addf %201, %205 : vector<2x256xf32>
    %c0_98 = arith.constant 0 : index
    %c84 = arith.constant 84 : index
    %207 = vector.load %arg5[%c0_98, %c84] : memref<2x358xf32, #tpu.memory_space<vmem>>, vector<2x256xf32>
    %c0_99 = arith.constant 0 : index
    %c39 = arith.constant 39 : index
    %208 = vector.load %arg1[%c0_99, %c39] : memref<2x49xf32, #tpu.memory_space<vmem>>, vector<2x1xf32>
    %209 = vector.broadcast %208 : vector<2x1xf32> to vector<2x256xf32>
    %210 = arith.mulf %207, %209 : vector<2x256xf32>
    %211 = arith.addf %206, %210 : vector<2x256xf32>
    %c0_100 = arith.constant 0 : index
    %c100 = arith.constant 100 : index
    %212 = vector.load %arg5[%c0_100, %c100] : memref<2x358xf32, #tpu.memory_space<vmem>>, vector<2x256xf32>
    %c0_101 = arith.constant 0 : index
    %c46 = arith.constant 46 : index
    %213 = vector.load %arg1[%c0_101, %c46] : memref<2x49xf32, #tpu.memory_space<vmem>>, vector<2x1xf32>
    %214 = vector.broadcast %213 : vector<2x1xf32> to vector<2x256xf32>
    %215 = arith.mulf %212, %214 : vector<2x256xf32>
    %216 = arith.addf %211, %215 : vector<2x256xf32>
    %217 = vector.broadcast %29 : vector<1x256xf32> to vector<2x256xf32>
    %218 = arith.mulf %216, %217 : vector<2x256xf32>
    %219 = arith.addf %182, %218 : vector<2x256xf32>
    %c0_102 = arith.constant 0 : index
    %c5 = arith.constant 5 : index
    %220 = vector.load %arg5[%c0_102, %c5] : memref<2x358xf32, #tpu.memory_space<vmem>>, vector<2x256xf32>
    %c0_103 = arith.constant 0 : index
    %c5_104 = arith.constant 5 : index
    %221 = vector.load %arg1[%c0_103, %c5_104] : memref<2x49xf32, #tpu.memory_space<vmem>>, vector<2x1xf32>
    %222 = vector.broadcast %221 : vector<2x1xf32> to vector<2x256xf32>
    %223 = arith.mulf %220, %222 : vector<2x256xf32>
    %c0_105 = arith.constant 0 : index
    %c21_106 = arith.constant 21 : index
    %224 = vector.load %arg5[%c0_105, %c21_106] : memref<2x358xf32, #tpu.memory_space<vmem>>, vector<2x256xf32>
    %c0_107 = arith.constant 0 : index
    %c12 = arith.constant 12 : index
    %225 = vector.load %arg1[%c0_107, %c12] : memref<2x49xf32, #tpu.memory_space<vmem>>, vector<2x1xf32>
    %226 = vector.broadcast %225 : vector<2x1xf32> to vector<2x256xf32>
    %227 = arith.mulf %224, %226 : vector<2x256xf32>
    %228 = arith.addf %223, %227 : vector<2x256xf32>
    %c0_108 = arith.constant 0 : index
    %c37_109 = arith.constant 37 : index
    %229 = vector.load %arg5[%c0_108, %c37_109] : memref<2x358xf32, #tpu.memory_space<vmem>>, vector<2x256xf32>
    %c0_110 = arith.constant 0 : index
    %c19_111 = arith.constant 19 : index
    %230 = vector.load %arg1[%c0_110, %c19_111] : memref<2x49xf32, #tpu.memory_space<vmem>>, vector<2x1xf32>
    %231 = vector.broadcast %230 : vector<2x1xf32> to vector<2x256xf32>
    %232 = arith.mulf %229, %231 : vector<2x256xf32>
    %233 = arith.addf %228, %232 : vector<2x256xf32>
    %c0_112 = arith.constant 0 : index
    %c53 = arith.constant 53 : index
    %234 = vector.load %arg5[%c0_112, %c53] : memref<2x358xf32, #tpu.memory_space<vmem>>, vector<2x256xf32>
    %c0_113 = arith.constant 0 : index
    %c26 = arith.constant 26 : index
    %235 = vector.load %arg1[%c0_113, %c26] : memref<2x49xf32, #tpu.memory_space<vmem>>, vector<2x1xf32>
    %236 = vector.broadcast %235 : vector<2x1xf32> to vector<2x256xf32>
    %237 = arith.mulf %234, %236 : vector<2x256xf32>
    %238 = arith.addf %233, %237 : vector<2x256xf32>
    %c0_114 = arith.constant 0 : index
    %c69 = arith.constant 69 : index
    %239 = vector.load %arg5[%c0_114, %c69] : memref<2x358xf32, #tpu.memory_space<vmem>>, vector<2x256xf32>
    %c0_115 = arith.constant 0 : index
    %c33_116 = arith.constant 33 : index
    %240 = vector.load %arg1[%c0_115, %c33_116] : memref<2x49xf32, #tpu.memory_space<vmem>>, vector<2x1xf32>
    %241 = vector.broadcast %240 : vector<2x1xf32> to vector<2x256xf32>
    %242 = arith.mulf %239, %241 : vector<2x256xf32>
    %243 = arith.addf %238, %242 : vector<2x256xf32>
    %c0_117 = arith.constant 0 : index
    %c85 = arith.constant 85 : index
    %244 = vector.load %arg5[%c0_117, %c85] : memref<2x358xf32, #tpu.memory_space<vmem>>, vector<2x256xf32>
    %c0_118 = arith.constant 0 : index
    %c40 = arith.constant 40 : index
    %245 = vector.load %arg1[%c0_118, %c40] : memref<2x49xf32, #tpu.memory_space<vmem>>, vector<2x1xf32>
    %246 = vector.broadcast %245 : vector<2x1xf32> to vector<2x256xf32>
    %247 = arith.mulf %244, %246 : vector<2x256xf32>
    %248 = arith.addf %243, %247 : vector<2x256xf32>
    %c0_119 = arith.constant 0 : index
    %c101 = arith.constant 101 : index
    %249 = vector.load %arg5[%c0_119, %c101] : memref<2x358xf32, #tpu.memory_space<vmem>>, vector<2x256xf32>
    %c0_120 = arith.constant 0 : index
    %c47 = arith.constant 47 : index
    %250 = vector.load %arg1[%c0_120, %c47] : memref<2x49xf32, #tpu.memory_space<vmem>>, vector<2x1xf32>
    %251 = vector.broadcast %250 : vector<2x1xf32> to vector<2x256xf32>
    %252 = arith.mulf %249, %251 : vector<2x256xf32>
    %253 = arith.addf %248, %252 : vector<2x256xf32>
    %254 = vector.broadcast %33 : vector<1x256xf32> to vector<2x256xf32>
    %255 = arith.mulf %253, %254 : vector<2x256xf32>
    %256 = arith.addf %219, %255 : vector<2x256xf32>
    %c0_121 = arith.constant 0 : index
    %c6 = arith.constant 6 : index
    %257 = vector.load %arg5[%c0_121, %c6] : memref<2x358xf32, #tpu.memory_space<vmem>>, vector<2x256xf32>
    %c0_122 = arith.constant 0 : index
    %c6_123 = arith.constant 6 : index
    %258 = vector.load %arg1[%c0_122, %c6_123] : memref<2x49xf32, #tpu.memory_space<vmem>>, vector<2x1xf32>
    %259 = vector.broadcast %258 : vector<2x1xf32> to vector<2x256xf32>
    %260 = arith.mulf %257, %259 : vector<2x256xf32>
    %c0_124 = arith.constant 0 : index
    %c22_125 = arith.constant 22 : index
    %261 = vector.load %arg5[%c0_124, %c22_125] : memref<2x358xf32, #tpu.memory_space<vmem>>, vector<2x256xf32>
    %c0_126 = arith.constant 0 : index
    %c13 = arith.constant 13 : index
    %262 = vector.load %arg1[%c0_126, %c13] : memref<2x49xf32, #tpu.memory_space<vmem>>, vector<2x1xf32>
    %263 = vector.broadcast %262 : vector<2x1xf32> to vector<2x256xf32>
    %264 = arith.mulf %261, %263 : vector<2x256xf32>
    %265 = arith.addf %260, %264 : vector<2x256xf32>
    %c0_127 = arith.constant 0 : index
    %c38_128 = arith.constant 38 : index
    %266 = vector.load %arg5[%c0_127, %c38_128] : memref<2x358xf32, #tpu.memory_space<vmem>>, vector<2x256xf32>
    %c0_129 = arith.constant 0 : index
    %c20_130 = arith.constant 20 : index
    %267 = vector.load %arg1[%c0_129, %c20_130] : memref<2x49xf32, #tpu.memory_space<vmem>>, vector<2x1xf32>
    %268 = vector.broadcast %267 : vector<2x1xf32> to vector<2x256xf32>
    %269 = arith.mulf %266, %268 : vector<2x256xf32>
    %270 = arith.addf %265, %269 : vector<2x256xf32>
    %c0_131 = arith.constant 0 : index
    %c54 = arith.constant 54 : index
    %271 = vector.load %arg5[%c0_131, %c54] : memref<2x358xf32, #tpu.memory_space<vmem>>, vector<2x256xf32>
    %c0_132 = arith.constant 0 : index
    %c27 = arith.constant 27 : index
    %272 = vector.load %arg1[%c0_132, %c27] : memref<2x49xf32, #tpu.memory_space<vmem>>, vector<2x1xf32>
    %273 = vector.broadcast %272 : vector<2x1xf32> to vector<2x256xf32>
    %274 = arith.mulf %271, %273 : vector<2x256xf32>
    %275 = arith.addf %270, %274 : vector<2x256xf32>
    %c0_133 = arith.constant 0 : index
    %c70 = arith.constant 70 : index
    %276 = vector.load %arg5[%c0_133, %c70] : memref<2x358xf32, #tpu.memory_space<vmem>>, vector<2x256xf32>
    %c0_134 = arith.constant 0 : index
    %c34_135 = arith.constant 34 : index
    %277 = vector.load %arg1[%c0_134, %c34_135] : memref<2x49xf32, #tpu.memory_space<vmem>>, vector<2x1xf32>
    %278 = vector.broadcast %277 : vector<2x1xf32> to vector<2x256xf32>
    %279 = arith.mulf %276, %278 : vector<2x256xf32>
    %280 = arith.addf %275, %279 : vector<2x256xf32>
    %c0_136 = arith.constant 0 : index
    %c86 = arith.constant 86 : index
    %281 = vector.load %arg5[%c0_136, %c86] : memref<2x358xf32, #tpu.memory_space<vmem>>, vector<2x256xf32>
    %c0_137 = arith.constant 0 : index
    %c41 = arith.constant 41 : index
    %282 = vector.load %arg1[%c0_137, %c41] : memref<2x49xf32, #tpu.memory_space<vmem>>, vector<2x1xf32>
    %283 = vector.broadcast %282 : vector<2x1xf32> to vector<2x256xf32>
    %284 = arith.mulf %281, %283 : vector<2x256xf32>
    %285 = arith.addf %280, %284 : vector<2x256xf32>
    %c0_138 = arith.constant 0 : index
    %c102 = arith.constant 102 : index
    %286 = vector.load %arg5[%c0_138, %c102] : memref<2x358xf32, #tpu.memory_space<vmem>>, vector<2x256xf32>
    %c0_139 = arith.constant 0 : index
    %c48_140 = arith.constant 48 : index
    %287 = vector.load %arg1[%c0_139, %c48_140] : memref<2x49xf32, #tpu.memory_space<vmem>>, vector<2x1xf32>
    %288 = vector.broadcast %287 : vector<2x1xf32> to vector<2x256xf32>
    %289 = arith.mulf %286, %288 : vector<2x256xf32>
    %290 = arith.addf %285, %289 : vector<2x256xf32>
    %291 = vector.broadcast %37 : vector<1x256xf32> to vector<2x256xf32>
    %292 = arith.mulf %290, %291 : vector<2x256xf32>
    %293 = arith.addf %256, %292 : vector<2x256xf32>
    %cst_141 = arith.constant dense<0.000000e+00> : vector<256xf32>
    %294 = vector.multi_reduction <add>, %293, %cst_141 [0] : vector<2x256xf32> to vector<256xf32>
    %295 = vector.shape_cast %294 : vector<256xf32> to vector<1x256xf32>
    %296 = arith.negf %295 : vector<1x256xf32>
    %297 = math.exp %296 : vector<1x256xf32>
    %cst_142 = arith.constant 1.000000e+00 : f32
    %298 = vector.broadcast %cst_142 : f32 to vector<1x256xf32>
    %299 = arith.addf %298, %297 : vector<1x256xf32>
    %300 = arith.divf %298, %299 : vector<1x256xf32>
    %c0_143 = arith.constant 0 : index
    %c0_144 = arith.constant 0 : index
    %c0_145 = arith.constant 0 : index
    %301 = vector.load %arg3[%c0_143, %c0_144, %c0_145] : memref<1x4x256xf32, #tpu.memory_space<vmem>>, vector<1x4x256xf32>
    %302 = vector.shape_cast %301 : vector<1x4x256xf32> to vector<4x256xf32>
    %303 = vector.broadcast %300 : vector<1x256xf32> to vector<4x256xf32>
    %304 = arith.mulf %303, %302 : vector<4x256xf32>
    %c0_146 = arith.constant 0 : index
    %c0_147 = arith.constant 0 : index
    %c0_148 = arith.constant 0 : index
    %305 = vector.load %arg4[%c0_146, %c0_147, %c0_148] : memref<1x4x256xf32, #tpu.memory_space<vmem>>, vector<1x4x256xf32>
    %306 = vector.shape_cast %305 : vector<1x4x256xf32> to vector<4x256xf32>
    %307 = vector.shape_cast %304 : vector<4x256xf32> to vector<1x4x256xf32>
    tpu.vector_store %arg4[%c0_146, %c0_147, %c0_148], %307 {strides = array<i32>} : memref<1x4x256xf32, #tpu.memory_space<vmem>>, vector<1x4x256xf32>,
    return
  }
  func.func @transform_0(%arg0: i32) -> (i32, i32) {
    %c0_i32 = arith.constant 0 : i32
    %c0_i32_0 = arith.constant 0 : i32
    %c0_i32_1 = arith.constant 0 : i32
    return %c0_i32, %c0_i32_0 : i32, i32
  }
  func.func @transform_1(%arg0: i32) -> (i32, i32) {
    %c0_i32 = arith.constant 0 : i32
    %c0_i32_0 = arith.constant 0 : i32
    %c0_i32_1 = arith.constant 0 : i32
    return %c0_i32, %c0_i32_0 : i32, i32
  }
  func.func @transform_2(%arg0: i32) -> (i32, i32, i32) {
    %c0_i32 = arith.constant 0 : i32
    %c0_i32_0 = arith.constant 0 : i32
    %c0_i32_1 = arith.constant 0 : i32
    return %arg0, %c0_i32, %c0_i32_0 : i32, i32, i32
  }
  func.func @transform_3(%arg0: i32) -> (i32, i32, i32) {
    %c0_i32 = arith.constant 0 : i32
    %c0_i32_0 = arith.constant 0 : i32
    %c0_i32_1 = arith.constant 0 : i32
    return %arg0, %c0_i32, %c0_i32_0 : i32, i32, i32
  }
}

</mosaic_0001>

<llo_original>
// kernel: tpu_custom_call.1
$region0: #{tpu_custom_call.1}
  #allocation0 [shape = 'u32[]', space=smem, size = 0x4, offset = 0x4, fixed_abs, tag = 'smem constant byte address 0x4 - core index']
  #allocation1 [shape = 'u32[144,128]{1,0:T(1,128)}', space=vmem, size = 0x12000, scoped, tag = 'internal scratch']
  #allocation2 [shape = 'f32[2,358]{1,0:T(2,128)}', space=vmem, size = 0xc00, scoped, tag = 'scratch operand']
  %s0 = inlined_call_operand.hbm [shape: f32[2,49], index: 0, kind: input, shape index: {}]
  %s1 = inlined_call_operand.vmem [shape: f32[1,256], index: 1, kind: input, shape index: {}]
  %s2 = inlined_call_operand.hbm [shape: f32[2,4,256], index: 2, kind: input, shape index: {}]
  %s3 = inlined_call_operand.hbm [shape: f32[2,4,256], index: 3, kind: output, shape index: {}]
  %s4 = sld [smem:[#allocation0]]
  $region53: #{tpu_custom_call.1} parent=0
    _
  %s6 = ssub.s32 1, %s4
  %s7 = scalar_select 0, %s6, %s4
  $region1: #{tpu_custom_call.1} parent=0
    #allocation3 [shape = 'u8[1024]{0}', space=vmem, size = 0x400, scoped, tag = 'input window, operand 0, single buffered']
    #allocation4 [shape = 's32[2]{0}', space=sflag, size = 0x8, scoped, tag = 'scoped memory for tpu_custom_call.1']
    #allocation5 [shape = 's32[2]{0}', space=sflag, size = 0x8, scoped, tag = 'scoped memory for tpu_custom_call.1']
    #allocation6 [shape = 'u8[8192]{0}', space=vmem, size = 0x2000, scoped, tag = 'input window, operand 2']
    #allocation7 [shape = 's32[2]{0}', space=sflag, size = 0x8, scoped, tag = 'scoped memory for tpu_custom_call.1']
    #allocation8 [shape = 'u8[8192]{0}', space=vmem, size = 0x2000, scoped, tag = 'output window, operand 0']
    %8 = vsyncpa [#allocation4], 0
    %9 = vsyncpa [#allocation7], 0
    %s10 = scalar_lea.sflag [#allocation7], 1
    %11 = vsyncpa %s10, 0
    %12 = vsyncpa [#allocation5], 0
    %s13 = scalar_lea.sflag [#allocation5], 1
    %14 = vsyncpa %s13, 0
    loop: start=0, step=1, limit=4
    $region2: #{tpu_custom_call.1} parent=1 // loop_pre_header
      _
    $region3: #{tpu_custom_call.1} parent=1 // loop_header
      %s16 = sphi 0, %s20
      %p17 = scmp.ge.s32.totalorder %s16, 4
      %s24 = sphi 0, %s24
      %s26 = sphi 0, %s24
      %s27 = sphi 0, %s26
      %s41 = sphi 0, %s27
      %s45 = sphi 0, %s45
      %s47 = sphi 0, %s45
      %s48 = sphi 0, %s47
      %s62 = sphi 0, %s48
      %s68 = sphi 0, %s70
      %s71 = sphi 0, %s68
      %s72 = sphi 0, %s71
      %s88 = sphi 0, %s72
      %s94 = sphi 0, %s96
      %s97 = sphi 0, %s94
      %s98 = sphi 0, %s97
      %s114 = sphi 0, %s98
    $region4: #{tpu_custom_call.1} parent=1 // loop_header_branch
      %19 = sbr.rel (%p17) target = $region8
    $region5: #{tpu_custom_call.1} parent=1 // loop_body
      %s21 = ssub.s32 %s16, 1
      %s22 = ssub.s32 %s16, 2
      %s23 = sadd.s32 %s16, 1
      %s25 = sadd.s32 %s24, 1
      %p28 = scmp.eq.s32.totalorder %s16, 1
      %p29 = scmp.ne.s32.totalorder %s24, %s26
      %p30 = scmp.eq.s32.totalorder %s16, 0
      %p31 = por %p29, %p30
      %p32 = scmp.ne.s32.totalorder %s24, %s26
      %p33 = scmp.eq.s32.totalorder %s21, 1
      %p34 = por %p32, %p33
      %p35 = scmp.ne.s32.totalorder %s26, %s27
      %p36 = scmp.eq.s32.totalorder %s21, 0
      %p37 = por %p35, %p36
      %p38 = scmp.ne.s32.totalorder %s26, %s27
      %p39 = scmp.eq.s32.totalorder %s22, 1
      %p40 = por %p38, %p39
      %p42 = scmp.ne.s32.totalorder %s27, %s41
      %p43 = scmp.eq.s32.totalorder %s22, 0
      %p44 = por %p42, %p43
      %s46 = sadd.s32 %s45, 1
      %p49 = scmp.eq.s32.totalorder %s16, 1
      %p50 = scmp.ne.s32.totalorder %s45, %s47
      %p51 = scmp.eq.s32.totalorder %s16, 0
      %p52 = por %p50, %p51
      %p53 = scmp.ne.s32.totalorder %s45, %s47
      %p54 = scmp.eq.s32.totalorder %s21, 1
      %p55 = por %p53, %p54
      %p56 = scmp.ne.s32.totalorder %s47, %s48
      %p57 = scmp.eq.s32.totalorder %s21, 0
      %p58 = por %p56, %p57
      %p59 = scmp.ne.s32.totalorder %s47, %s48
      %p60 = scmp.eq.s32.totalorder %s22, 1
      %p61 = por %p59, %p60
      %p63 = scmp.ne.s32.totalorder %s48, %s62
      %p64 = scmp.eq.s32.totalorder %s22, 0
      %p65 = por %p63, %p64
      %s66 = ssub.s32 %s16, %s23
      %p67 = scmp.eq.s32.totalorder %s66, 0
      %s69 = sadd.s32 %s68, 1
      %s70 = scalar_select %p67, %s68, %s69
      %p73 = pneg %p67
      %p74 = scmp.eq.s32.totalorder %s16, 1
      %p75 = por %p73, %p74
      %p76 = scmp.ne.s32.totalorder %s68, %s71
      %p77 = scmp.eq.s32.totalorder %s16, 0
      %p78 = por %p76, %p77
      %p79 = scmp.ne.s32.totalorder %s68, %s71
      %p80 = scmp.eq.s32.totalorder %s21, 1
      %p81 = por %p79, %p80
      %p82 = scmp.ne.s32.totalorder %s71, %s72
      %p83 = scmp.eq.s32.totalorder %s21, 0
      %p84 = por %p82, %p83
      %p85 = scmp.ne.s32.totalorder %s71, %s72
      %p86 = scmp.eq.s32.totalorder %s22, 1
      %p87 = por %p85, %p86
      %p89 = scmp.ne.s32.totalorder %s72, %s88
      %p90 = scmp.eq.s32.totalorder %s22, 0
      %p91 = por %p89, %p90
      %s92 = ssub.s32 %s16, %s23
      %p93 = scmp.eq.s32.totalorder %s92, 0
      %s95 = sadd.s32 %s94, 1
      %s96 = scalar_select %p93, %s94, %s95
      %p99 = pneg %p93
      %p100 = scmp.eq.s32.totalorder %s16, 1
      %p101 = por %p99, %p100
      %p102 = scmp.ne.s32.totalorder %s94, %s97
      %p103 = scmp.eq.s32.totalorder %s16, 0
      %p104 = por %p102, %p103
      %p105 = scmp.ne.s32.totalorder %s94, %s97
      %p106 = scmp.eq.s32.totalorder %s21, 1
      %p107 = por %p105, %p106
      %p108 = scmp.ne.s32.totalorder %s97, %s98
      %p109 = scmp.eq.s32.totalorder %s21, 0
      %p110 = por %p108, %p109
      %p111 = scmp.ne.s32.totalorder %s97, %s98
      %p112 = scmp.eq.s32.totalorder %s22, 1
      %p113 = por %p111, %p112
      %p115 = scmp.ne.s32.totalorder %s98, %s114
      %p116 = scmp.eq.s32.totalorder %s22, 0
      %p117 = por %p115, %p116
      %p118 = scmp.le.s32.totalorder 1, %s16
      %p119 = scmp.lt.s32.totalorder %s16, 3
      %p120 = pnand %p118, %p119
      %p121 = pneg %p120
      // Predicated region
      $region9: #{tpu_custom_call.1} parent=5 // pred_check
        _
      $region10: #{tpu_custom_call.1} parent=5 // pred_check_branch
        %123 = sbr.rel (%p120) target = $region12
      $region11: #{tpu_custom_call.1} parent=5 // pred_region
        %s124 = ssub.s32 %s16, 1
        // Predicated region
        $region13: #{tpu_custom_call.1} parent=11 // pred_check
          %p125 = pneg %p37
        $region14: #{tpu_custom_call.1} parent=11 // pred_check_branch
          %127 = sbr.rel (%p125) target = $region16
        $region15: #{tpu_custom_call.1} parent=11 // pred_region
          %s129 = ssub.s32 32, 32
          %130 = vsyncadd [#allocation4], %s129
          %s132 = sshll.u32 [#allocation3], 4
          %s133 = int_to_ptr.vmem [resolvable:$true] %s132
          %135 = dma.hbm_to_vmem [thread:$0]  %s0, 32, %s133, [#allocation4]
        $region16: #{tpu_custom_call.1} parent=11 // pred_fallthru
          _
        // Predicated region
        $region17: #{tpu_custom_call.1} parent=11 // pred_check
          %p136 = pneg %p58
        $region18: #{tpu_custom_call.1} parent=11 // pred_check_branch
          %138 = sbr.rel (%p136) target = $region20
        $region19: #{tpu_custom_call.1} parent=11 // pred_region
          _
        $region20: #{tpu_custom_call.1} parent=11 // pred_fallthru
          _
      $region12: #{tpu_custom_call.1} parent=5 // pred_fallthru
        _
      %p139 = scmp.lt.s32.totalorder %s16, 2
      // Predicated region
      $region21: #{tpu_custom_call.1} parent=5 // pred_check
        %p140 = pneg %p139
      $region22: #{tpu_custom_call.1} parent=5 // pred_check_branch
        %142 = sbr.rel (%p140) target = $region24
      $region23: #{tpu_custom_call.1} parent=5 // pred_region
        // Predicated region
        $region25: #{tpu_custom_call.1} parent=23 // pred_check
          %p143 = pneg %p78
        $region26: #{tpu_custom_call.1} parent=23 // pred_check_branch
          %145 = sbr.rel (%p143) target = $region28
        $region27: #{tpu_custom_call.1} parent=23 // pred_region
          %s146 = sand.u32 %s68, 1
          %s147 = scalar_lea.sflag [#allocation7], %s146
          %s148 = sand.u32 %s68, 1
          %s149 = smul.addr %s148, 8
          %s150 = scalar_lea.vmem [#allocation6], %s149
          %s152 = ssub.s32 128, 128
          %153 = vsyncadd %s147, %s152
          %s154 = smul.addr %s16, 2
          %s155 = smul.addr %s154, 64
          %s156 = scalar_lea.hbm %s2, %s155
          %s158 = sshll.u32 %s150, 4
          %s159 = int_to_ptr.vmem [resolvable:$true] %s158
          %161 = dma.hbm_to_vmem [thread:$0]  %s156, 128, %s159, %s147
        $region28: #{tpu_custom_call.1} parent=23 // pred_fallthru
          _
      $region24: #{tpu_custom_call.1} parent=5 // pred_fallthru
        _
      %p162 = scmp.le.s32.totalorder 1, %s16
      %p163 = scmp.lt.s32.totalorder %s16, 3
      %p164 = pnand %p162, %p163
      %p165 = pneg %p164
      // Predicated region
      $region29: #{tpu_custom_call.1} parent=5 // pred_check
        _
      $region30: #{tpu_custom_call.1} parent=5 // pred_check_branch
        %167 = sbr.rel (%p164) target = $region32
      $region31: #{tpu_custom_call.1} parent=5 // pred_region
        %s168 = ssub.s32 %s16, 1
        // Predicated region
        $region33: #{tpu_custom_call.1} parent=31 // pred_check
          %p169 = pneg %p37
        $region34: #{tpu_custom_call.1} parent=31 // pred_check_branch
          %171 = sbr.rel (%p169) target = $region36
        $region35: #{tpu_custom_call.1} parent=31 // pred_region
          %172 = dma.done [#allocation4], 32
        $region36: #{tpu_custom_call.1} parent=31 // pred_fallthru
          _
        %s173 = sand.u32 %s71, 1
        %s174 = scalar_lea.sflag [#allocation7], %s173
        %s175 = sand.u32 %s71, 1
        %s176 = smul.addr %s175, 8
        %s177 = scalar_lea.vmem [#allocation6], %s176
        // Predicated region
        $region37: #{tpu_custom_call.1} parent=31 // pred_check
          %p178 = pneg %p84
        $region38: #{tpu_custom_call.1} parent=31 // pred_check_branch
          %180 = sbr.rel (%p178) target = $region40
        $region39: #{tpu_custom_call.1} parent=31 // pred_region
          %181 = dma.done %s174, 128
        $region40: #{tpu_custom_call.1} parent=31 // pred_fallthru
          _
        %p182 = pneg %p37
        %p183 = pneg %p34
        %p184 = pneg %p58
        %p185 = pneg %p55
        %s186 = sand.u32 %s71, 1
        %s187 = scalar_lea.sflag [#allocation7], %s186
        %s188 = sand.u32 %s71, 1
        %s189 = smul.addr %s188, 8
        %s190 = scalar_lea.vmem [#allocation6], %s189
        %p191 = pneg %p84
        %p192 = pneg %p81
        %p193 = pneg %p110
        %p194 = pneg %p107
        %s195 = sand.u32 %s97, 1
        %s196 = scalar_lea.sflag [#allocation5], %s195
        %s197 = sand.u32 %s97, 1
        %s198 = smul.addr %s197, 8
        %s199 = scalar_lea.vmem [#allocation8], %s198
        %v200 = vld [vmem:[%s177] sm:$0xff]
        %v202 = vcombine.high %v200, %v200
        %vm204 = vcmask 1043456
        %v205 = vsel %vm204, %v200, 0.0
        %v206 = vrot.slane %v205, 4
        %v207 = vadd.f32 %v205, %v206
        %v208 = vrot.slane %v207, 2
        %v209 = vadd.f32 %v207, %v208
        %v210 = vrot.slane %v209, 1
        %v211 = vadd.f32 %v209, %v210
        %v212 = vsel %vm204, %v202, 0.0
        %v213 = vrot.slane %v212, 4
        %v214 = vadd.f32 %v212, %v213
        %v215 = vrot.slane %v214, 2
        %v216 = vadd.f32 %v214, %v215
        %v217 = vrot.slane %v216, 1
        %v218 = vadd.f32 %v216, %v217
        %v219 = vsel %vm204, %v200, -inf
        %v220 = vrot.slane %v219, 4
        %v221 = vmax.f32 %v219, %v220
        %v222 = vrot.slane %v221, 2
        %v223 = vmax.f32 %v221, %v222
        %v224 = vrot.slane %v223, 1
        %v225 = vmax.f32 %v223, %v224
        %v226 = vsel %vm204, %v202, -inf
        %v227 = vrot.slane %v226, 4
        %v228 = vmax.f32 %v226, %v227
        %v229 = vrot.slane %v228, 2
        %v230 = vmax.f32 %v228, %v229
        %v231 = vrot.slane %v230, 1
        %v232 = vmax.f32 %v230, %v231
        %v233 = vmul.f32 %v211, 0.25
        %v234 = vmul.f32 %v218, 0.25
        %v235 = vld [vmem:[%s1] sm:$0x3]
        %vm236 = vcmask 410624
        %237 = vst.msk [vmem:[#allocation2] sm:$0x3] %vm236, 0.0
        %vm238 = vcmask 828824
        %239 = vst.msk [vmem:[#allocation2 + $0x4] sm:$0x3] %vm238, 0.0
        %v242 = vcombine.low %v233, %v234
        %v244 = vunpack.c.l.s4 1966171168
        %v245 = vunpack.c.0.s8 %v244
        %v246 = vlaneseq
        %v247 = vshrl.u32 %v246, 7
        %v248 = vsub.s32 %v245, %v247
        %v249 = vrot.slane %v242, %v248
        %v251 = vunpack.c.l.s4 1966171168
        %v252 = vunpack.c.0.s8 %v251
        %v253 = vlaneseq
        %v254 = vshrl.u32 %v253, 7
        %v255 = vsub.s32 %v252, %v254
        %v256 = vrot.slane %v249, %v255
        %257 = vrot.lane.b32.xlu0 %v256, 51
        %v258 = vpop.permute.xlu0 %257
        %v259 = vrot.slane %v258, 7
        %vm260 = vcmask 416768
        %v261 = vsel %vm260, %v259, %v258
        %v263 = vlaneseq
        %vm264 = vcmp.ge.s32.totalorder %v263, 51
        %vm265 = vcmp.lt.s32.totalorder %v263, 307
        %vm266 = vmand %vm264, %vm265
        %267 = vst.msk [vmem:[#allocation2] ss:$2 sm:$0x7] %vm266, %v261
        %v270 = vcombine.low %v225, %v232
        %v272 = vunpack.c.l.s4 1966171168
        %v273 = vunpack.c.0.s8 %v272
        %v274 = vlaneseq
        %v275 = vshrl.u32 %v274, 7
        %v276 = vsub.s32 %v273, %v275
        %v277 = vrot.slane %v270, %v276
        %v279 = vunpack.c.l.s4 1966171168
        %v280 = vunpack.c.0.s8 %v279
        %v281 = vlaneseq
        %v282 = vshrl.u32 %v281, 7
        %v283 = vsub.s32 %v280, %v282
        %v284 = vrot.slane %v277, %v283
        %285 = vrot.lane.b32.xlu0 %v284, 51
        %v286 = vpop.permute.xlu0 %285
        %v287 = vrot.slane %v286, 7
        %v288 = vsel %vm260, %v287, %v286
        %s290 = scalar_lea.vmem [#allocation2], 1
        %291 = vst.msk [vmem:[%s290] ss:$2 sm:$0x7] %vm266, %v288
        %vm292 = vcmp.ge.f32.partialorder %v235, 3.0
        %v293 = vsel %vm292, 1, 0
        %v294 = vcvt.s32.f32 %v293
        %vm295 = vcmp.ge.f32.partialorder %v235, 2.0
        %v296 = vsel %vm295, 1, 0
        %v297 = vcvt.s32.f32 %v296
        %vm298 = vcmp.ge.f32.partialorder %v235, 1.0
        %v299 = vsel %vm298, 1, 0
        %v300 = vcvt.s32.f32 %v299
        %vm301 = vcmp.lt.f32.partialorder %v235, 15.0
        %v302 = vsel %vm301, 1, 0
        %v303 = vcvt.s32.f32 %v302
        %vm304 = vcmp.lt.f32.partialorder %v235, 14.0
        %v305 = vsel %vm304, 1, 0
        %v306 = vcvt.s32.f32 %v305
        %vm307 = vcmp.lt.f32.partialorder %v235, 13.0
        %v308 = vsel %vm307, 1, 0
        %v309 = vcvt.s32.f32 %v308
        %v310 = vld [vmem:[#allocation2] sm:$0xf]
        %v311 = vld [vmem:[#allocation3] sm:$0x3]
        %313 = vset.pattern.permute.xlu0 0
        %314 = vperm.xlu0 %313, %v311
        %v315 = vpop.permute.xlu0 %314
        %v317 = vunpack.c.l.s4 269488144
        %v318 = vunpack.c.0.s8 %v317
        %v319 = vlaneseq
        %v320 = vshrl.u32 %v319, 7
        %v321 = vsub.s32 %v318, %v320
        %v322 = vrot.slane %v315, %v321
        %v324 = vmul.f32 %v310, %v322
        %v325 = vld [vmem:[#allocation2] sm:$0x3f]
        %326 = vset.pattern.permute.xlu0 7
        %327 = vperm.xlu0 %326, %v311
        %v328 = vpop.permute.xlu0 %327
        %v330 = vunpack.c.l.s4 269488144
        %v331 = vunpack.c.0.s8 %v330
        %v332 = vlaneseq
        %v333 = vshrl.u32 %v332, 7
        %v334 = vsub.s32 %v331, %v333
        %v335 = vrot.slane %v328, %v334
        %v337 = vmul.f32 %v325, %v335
        %339 = vrot.lane.b32.xlu0 %v337, 112
        %v340 = vpop.permute.xlu0 %339
        %v341 = vrot.slane %v340, 2
        %vm342 = vcmask 916480
        %v343 = vsel %vm342, %v340, %v341
        %v345 = vadd.f32 %v324, %v343
        %346 = vset.pattern.permute.xlu0 14
        %347 = vperm.xlu0 %346, %v311
        %v348 = vpop.permute.xlu0 %347
        %v350 = vunpack.c.l.s4 269488144
        %v351 = vunpack.c.0.s8 %v350
        %v352 = vlaneseq
        %v353 = vshrl.u32 %v352, 7
        %v354 = vsub.s32 %v351, %v353
        %v355 = vrot.slane %v348, %v354
        %v357 = vmul.f32 %v325, %v355
        %359 = vrot.lane.b32.xlu0 %v357, 96
        %v360 = vpop.permute.xlu0 %359
        %v361 = vrot.slane %v360, 2
        %vm362 = vcmask 785408
        %v363 = vsel %vm362, %v360, %v361
        %v365 = vadd.f32 %v345, %v363
        %366 = vset.pattern.permute.xlu0 21
        %367 = vperm.xlu0 %366, %v311
        %v368 = vpop.permute.xlu0 %367
        %v370 = vunpack.c.l.s4 269488144
        %v371 = vunpack.c.0.s8 %v370
        %v372 = vlaneseq
        %v373 = vshrl.u32 %v372, 7
        %v374 = vsub.s32 %v371, %v373
        %v375 = vrot.slane %v368, %v374
        %v377 = vmul.f32 %v325, %v375
        %379 = vrot.lane.b32.xlu0 %v377, 80
        %v380 = vpop.permute.xlu0 %379
        %v381 = vrot.slane %v380, 2
        %vm382 = vcmask 654336
        %v383 = vsel %vm382, %v380, %v381
        %v385 = vadd.f32 %v365, %v383
        %386 = vset.pattern.permute.xlu0 28
        %387 = vperm.xlu0 %386, %v311
        %v388 = vpop.permute.xlu0 %387
        %v390 = vunpack.c.l.s4 269488144
        %v391 = vunpack.c.0.s8 %v390
        %v392 = vlaneseq
        %v393 = vshrl.u32 %v392, 7
        %v394 = vsub.s32 %v391, %v393
        %v395 = vrot.slane %v388, %v394
        %v397 = vmul.f32 %v325, %v395
        %399 = vrot.lane.b32.xlu0 %v397, 64
        %v400 = vpop.permute.xlu0 %399
        %v401 = vrot.slane %v400, 2
        %vm402 = vcmask 523264
        %v403 = vsel %vm402, %v400, %v401
        %v405 = vadd.f32 %v385, %v403
        %406 = vset.pattern.permute.xlu0 35
        %407 = vperm.xlu0 %406, %v311
        %v408 = vpop.permute.xlu0 %407
        %v410 = vunpack.c.l.s4 269488144
        %v411 = vunpack.c.0.s8 %v410
        %v412 = vlaneseq
        %v413 = vshrl.u32 %v412, 7
        %v414 = vsub.s32 %v411, %v413
        %v415 = vrot.slane %v408, %v414
        %v417 = vmul.f32 %v325, %v415
        %419 = vrot.lane.b32.xlu0 %v417, 48
        %v420 = vpop.permute.xlu0 %419
        %v421 = vrot.slane %v420, 2
        %vm422 = vcmask 392192
        %v423 = vsel %vm422, %v420, %v421
        %v425 = vadd.f32 %v405, %v423
        %426 = vset.pattern.permute.xlu0 42
        %427 = vperm.xlu0 %426, %v311
        %v428 = vpop.permute.xlu0 %427
        %v430 = vunpack.c.l.s4 269488144
        %v431 = vunpack.c.0.s8 %v430
        %v432 = vlaneseq
        %v433 = vshrl.u32 %v432, 7
        %v434 = vsub.s32 %v431, %v433
        %v435 = vrot.slane %v428, %v434
        %v437 = vmul.f32 %v325, %v435
        %439 = vrot.lane.b32.xlu0 %v437, 32
        %v440 = vpop.permute.xlu0 %439
        %v441 = vrot.slane %v440, 2
        %vm442 = vcmask 261120
        %v443 = vsel %vm442, %v440, %v441
        %v445 = vadd.f32 %v425, %v443
        %v447 = vlaneseq
        %v448 = vshrl.u32 %v447, 7
        %v449 = vsub.s32 0, %v448
        %v450 = vrot.slane %v294, %v449
        %v451 = vlaneseq
        %v452 = vshrl.u32 %v451, 7
        %v453 = vsub.s32 1, %v452
        %v454 = vrot.slane %v294, %v453
        %v455 = vcombine.low %v450, %v454
        %v457 = vunpack.c.l.s4 1983009808
        %v458 = vunpack.c.0.s8 %v457
        %v459 = vlaneseq
        %v460 = vshrl.u32 %v459, 7
        %v461 = vsub.s32 %v458, %v460
        %v462 = vrot.slane %v455, %v461
        %v464 = vmul.f32 %v445, %v462
        %v465 = vld [vmem:[#allocation2] sm:$0x3f]
        %v466 = vld [vmem:[#allocation3] sm:$0x3]
        %468 = vset.pattern.permute.xlu0 1
        %469 = vperm.xlu0 %468, %v466
        %v470 = vpop.permute.xlu0 %469
        %v472 = vunpack.c.l.s4 269488144
        %v473 = vunpack.c.0.s8 %v472
        %v474 = vlaneseq
        %v475 = vshrl.u32 %v474, 7
        %v476 = vsub.s32 %v473, %v475
        %v477 = vrot.slane %v470, %v476
        %v479 = vmul.f32 %v465, %v477
        %480 = vset.pattern.permute.xlu0 8
        %481 = vperm.xlu0 %480, %v466
        %v482 = vpop.permute.xlu0 %481
        %v484 = vunpack.c.l.s4 269488144
        %v485 = vunpack.c.0.s8 %v484
        %v486 = vlaneseq
        %v487 = vshrl.u32 %v486, 7
        %v488 = vsub.s32 %v485, %v487
        %v489 = vrot.slane %v482, %v488
        %v491 = vmul.f32 %v465, %v489
        %493 = vrot.lane.b32.xlu0 %v491, 112
        %v494 = vpop.permute.xlu0 %493
        %v495 = vrot.slane %v494, 2
        %v496 = vsel %vm342, %v494, %v495
        %v498 = vadd.f32 %v479, %v496
        %499 = vset.pattern.permute.xlu0 15
        %500 = vperm.xlu0 %499, %v466
        %v501 = vpop.permute.xlu0 %500
        %v503 = vunpack.c.l.s4 269488144
        %v504 = vunpack.c.0.s8 %v503
        %v505 = vlaneseq
        %v506 = vshrl.u32 %v505, 7
        %v507 = vsub.s32 %v504, %v506
        %v508 = vrot.slane %v501, %v507
        %v510 = vmul.f32 %v465, %v508
        %512 = vrot.lane.b32.xlu0 %v510, 96
        %v513 = vpop.permute.xlu0 %512
        %v514 = vrot.slane %v513, 2
        %v515 = vsel %vm362, %v513, %v514
        %v517 = vadd.f32 %v498, %v515
        %518 = vset.pattern.permute.xlu0 22
        %519 = vperm.xlu0 %518, %v466
        %v520 = vpop.permute.xlu0 %519
        %v522 = vunpack.c.l.s4 269488144
        %v523 = vunpack.c.0.s8 %v522
        %v524 = vlaneseq
        %v525 = vshrl.u32 %v524, 7
        %v526 = vsub.s32 %v523, %v525
        %v527 = vrot.slane %v520, %v526
        %v529 = vmul.f32 %v465, %v527
        %531 = vrot.lane.b32.xlu0 %v529, 80
        %v532 = vpop.permute.xlu0 %531
        %v533 = vrot.slane %v532, 2
        %v534 = vsel %vm382, %v532, %v533
        %v536 = vadd.f32 %v517, %v534
        %537 = vset.pattern.permute.xlu0 29
        %538 = vperm.xlu0 %537, %v466
        %v539 = vpop.permute.xlu0 %538
        %v541 = vunpack.c.l.s4 269488144
        %v542 = vunpack.c.0.s8 %v541
        %v543 = vlaneseq
        %v544 = vshrl.u32 %v543, 7
        %v545 = vsub.s32 %v542, %v544
        %v546 = vrot.slane %v539, %v545
        %v548 = vmul.f32 %v465, %v546
        %550 = vrot.lane.b32.xlu0 %v548, 64
        %v551 = vpop.permute.xlu0 %550
        %v552 = vrot.slane %v551, 2
        %v553 = vsel %vm402, %v551, %v552
        %v555 = vadd.f32 %v536, %v553
        %556 = vset.pattern.permute.xlu0 36
        %557 = vperm.xlu0 %556, %v466
        %v558 = vpop.permute.xlu0 %557
        %v560 = vunpack.c.l.s4 269488144
        %v561 = vunpack.c.0.s8 %v560
        %v562 = vlaneseq
        %v563 = vshrl.u32 %v562, 7
        %v564 = vsub.s32 %v561, %v563
        %v565 = vrot.slane %v558, %v564
        %v567 = vmul.f32 %v465, %v565
        %569 = vrot.lane.b32.xlu0 %v567, 48
        %v570 = vpop.permute.xlu0 %569
        %v571 = vrot.slane %v570, 2
        %v572 = vsel %vm422, %v570, %v571
        %v574 = vadd.f32 %v555, %v572
        %575 = vset.pattern.permute.xlu0 43
        %576 = vperm.xlu0 %575, %v466
        %v577 = vpop.permute.xlu0 %576
        %v579 = vunpack.c.l.s4 269488144
        %v580 = vunpack.c.0.s8 %v579
        %v581 = vlaneseq
        %v582 = vshrl.u32 %v581, 7
        %v583 = vsub.s32 %v580, %v582
        %v584 = vrot.slane %v577, %v583
        %v586 = vmul.f32 %v465, %v584
        %588 = vrot.lane.b32.xlu0 %v586, 32
        %v589 = vpop.permute.xlu0 %588
        %v590 = vrot.slane %v589, 2
        %v591 = vsel %vm442, %v589, %v590
        %v593 = vadd.f32 %v574, %v591
        %v595 = vlaneseq
        %v596 = vshrl.u32 %v595, 7
        %v597 = vsub.s32 0, %v596
        %v598 = vrot.slane %v297, %v597
        %v599 = vlaneseq
        %v600 = vshrl.u32 %v599, 7
        %v601 = vsub.s32 1, %v600
        %v602 = vrot.slane %v297, %v601
        %v603 = vcombine.low %v598, %v602
        %v605 = vunpack.c.l.s4 1983009808
        %v606 = vunpack.c.0.s8 %v605
        %v607 = vlaneseq
        %v608 = vshrl.u32 %v607, 7
        %v609 = vsub.s32 %v606, %v608
        %v610 = vrot.slane %v603, %v609
        %611 = vrot.lane.b32.xlu0 %v610, 1
        %v612 = vpop.permute.xlu0 %611
        %v613 = vrot.slane %v612, 6
        %vm614 = vcmask 7168
        %v615 = vsel %vm614, %v613, %v612
        %v617 = vmul.f32 %v593, %v615
        %619 = vrot.lane.b32.xlu0 %v617, 127
        %v620 = vpop.permute.xlu0 %619
        %v621 = vrot.slane %v620, 2
        %vm622 = vcmask 1039360
        %v623 = vsel %vm622, %v620, %v621
        %v625 = vadd.f32 %v464, %v623
        %v626 = vld [vmem:[#allocation2] sm:$0x3f]
        %v627 = vld [vmem:[#allocation3] sm:$0x3]
        %629 = vset.pattern.permute.xlu0 2
        %630 = vperm.xlu0 %629, %v627
        %v631 = vpop.permute.xlu0 %630
        %v633 = vunpack.c.l.s4 269488144
        %v634 = vunpack.c.0.s8 %v633
        %v635 = vlaneseq
        %v636 = vshrl.u32 %v635, 7
        %v637 = vsub.s32 %v634, %v636
        %v638 = vrot.slane %v631, %v637
        %v640 = vmul.f32 %v626, %v638
        %641 = vset.pattern.permute.xlu0 9
        %642 = vperm.xlu0 %641, %v627
        %v643 = vpop.permute.xlu0 %642
        %v645 = vunpack.c.l.s4 269488144
        %v646 = vunpack.c.0.s8 %v645
        %v647 = vlaneseq
        %v648 = vshrl.u32 %v647, 7
        %v649 = vsub.s32 %v646, %v648
        %v650 = vrot.slane %v643, %v649
        %v652 = vmul.f32 %v626, %v650
        %654 = vrot.lane.b32.xlu0 %v652, 112
        %v655 = vpop.permute.xlu0 %654
        %v656 = vrot.slane %v655, 2
        %v657 = vsel %vm342, %v655, %v656
        %v659 = vadd.f32 %v640, %v657
        %660 = vset.pattern.permute.xlu0 16
        %661 = vperm.xlu0 %660, %v627
        %v662 = vpop.permute.xlu0 %661
        %v664 = vunpack.c.l.s4 269488144
        %v665 = vunpack.c.0.s8 %v664
        %v666 = vlaneseq
        %v667 = vshrl.u32 %v666, 7
        %v668 = vsub.s32 %v665, %v667
        %v669 = vrot.slane %v662, %v668
        %v671 = vmul.f32 %v626, %v669
        %673 = vrot.lane.b32.xlu0 %v671, 96
        %v674 = vpop.permute.xlu0 %673
        %v675 = vrot.slane %v674, 2
        %v676 = vsel %vm362, %v674, %v675
        %v678 = vadd.f32 %v659, %v676
        %679 = vset.pattern.permute.xlu0 23
        %680 = vperm.xlu0 %679, %v627
        %v681 = vpop.permute.xlu0 %680
        %v683 = vunpack.c.l.s4 269488144
        %v684 = vunpack.c.0.s8 %v683
        %v685 = vlaneseq
        %v686 = vshrl.u32 %v685, 7
        %v687 = vsub.s32 %v684, %v686
        %v688 = vrot.slane %v681, %v687
        %v690 = vmul.f32 %v626, %v688
        %692 = vrot.lane.b32.xlu0 %v690, 80
        %v693 = vpop.permute.xlu0 %692
        %v694 = vrot.slane %v693, 2
        %v695 = vsel %vm382, %v693, %v694
        %v697 = vadd.f32 %v678, %v695
        %698 = vset.pattern.permute.xlu0 30
        %699 = vperm.xlu0 %698, %v627
        %v700 = vpop.permute.xlu0 %699
        %v702 = vunpack.c.l.s4 269488144
        %v703 = vunpack.c.0.s8 %v702
        %v704 = vlaneseq
        %v705 = vshrl.u32 %v704, 7
        %v706 = vsub.s32 %v703, %v705
        %v707 = vrot.slane %v700, %v706
        %v709 = vmul.f32 %v626, %v707
        %711 = vrot.lane.b32.xlu0 %v709, 64
        %v712 = vpop.permute.xlu0 %711
        %v713 = vrot.slane %v712, 2
        %v714 = vsel %vm402, %v712, %v713
        %v716 = vadd.f32 %v697, %v714
        %717 = vset.pattern.permute.xlu0 37
        %718 = vperm.xlu0 %717, %v627
        %v719 = vpop.permute.xlu0 %718
        %v721 = vunpack.c.l.s4 269488144
        %v722 = vunpack.c.0.s8 %v721
        %v723 = vlaneseq
        %v724 = vshrl.u32 %v723, 7
        %v725 = vsub.s32 %v722, %v724
        %v726 = vrot.slane %v719, %v725
        %v728 = vmul.f32 %v626, %v726
        %730 = vrot.lane.b32.xlu0 %v728, 48
        %v731 = vpop.permute.xlu0 %730
        %v732 = vrot.slane %v731, 2
        %v733 = vsel %vm422, %v731, %v732
        %v735 = vadd.f32 %v716, %v733
        %736 = vset.pattern.permute.xlu0 44
        %737 = vperm.xlu0 %736, %v627
        %v738 = vpop.permute.xlu0 %737
        %v740 = vunpack.c.l.s4 269488144
        %v741 = vunpack.c.0.s8 %v740
        %v742 = vlaneseq
        %v743 = vshrl.u32 %v742, 7
        %v744 = vsub.s32 %v741, %v743
        %v745 = vrot.slane %v738, %v744
        %v747 = vmul.f32 %v626, %v745
        %749 = vrot.lane.b32.xlu0 %v747, 32
        %v750 = vpop.permute.xlu0 %749
        %v751 = vrot.slane %v750, 2
        %v752 = vsel %vm442, %v750, %v751
        %v754 = vadd.f32 %v735, %v752
        %v756 = vlaneseq
        %v757 = vshrl.u32 %v756, 7
        %v758 = vsub.s32 0, %v757
        %v759 = vrot.slane %v300, %v758
        %v760 = vlaneseq
        %v761 = vshrl.u32 %v760, 7
        %v762 = vsub.s32 1, %v761
        %v763 = vrot.slane %v300, %v762
        %v764 = vcombine.low %v759, %v763
        %v766 = vunpack.c.l.s4 1983009808
        %v767 = vunpack.c.0.s8 %v766
        %v768 = vlaneseq
        %v769 = vshrl.u32 %v768, 7
        %v770 = vsub.s32 %v767, %v769
        %v771 = vrot.slane %v764, %v770
        %772 = vrot.lane.b32.xlu0 %v771, 2
        %v773 = vpop.permute.xlu0 %772
        %v774 = vrot.slane %v773, 6
        %vm775 = vcmask 15360
        %v776 = vsel %vm775, %v774, %v773
        %v778 = vmul.f32 %v754, %v776
        %780 = vrot.lane.b32.xlu0 %v778, 126
        %v781 = vpop.permute.xlu0 %780
        %v782 = vrot.slane %v781, 2
        %vm783 = vcmask 1031168
        %v784 = vsel %vm783, %v781, %v782
        %v786 = vadd.f32 %v625, %v784
        %v787 = vld [vmem:[#allocation2] sm:$0x3f]
        %v788 = vld [vmem:[#allocation3] sm:$0x3]
        %790 = vset.pattern.permute.xlu0 3
        %791 = vperm.xlu0 %790, %v788
        %v792 = vpop.permute.xlu0 %791
        %v794 = vunpack.c.l.s4 269488144
        %v795 = vunpack.c.0.s8 %v794
        %v796 = vlaneseq
        %v797 = vshrl.u32 %v796, 7
        %v798 = vsub.s32 %v795, %v797
        %v799 = vrot.slane %v792, %v798
        %v801 = vmul.f32 %v787, %v799
        %802 = vset.pattern.permute.xlu0 10
        %803 = vperm.xlu0 %802, %v788
        %v804 = vpop.permute.xlu0 %803
        %v806 = vunpack.c.l.s4 269488144
        %v807 = vunpack.c.0.s8 %v806
        %v808 = vlaneseq
        %v809 = vshrl.u32 %v808, 7
        %v810 = vsub.s32 %v807, %v809
        %v811 = vrot.slane %v804, %v810
        %v813 = vmul.f32 %v787, %v811
        %815 = vrot.lane.b32.xlu0 %v813, 112
        %v816 = vpop.permute.xlu0 %815
        %v817 = vrot.slane %v816, 2
        %v818 = vsel %vm342, %v816, %v817
        %v820 = vadd.f32 %v801, %v818
        %821 = vset.pattern.permute.xlu0 17
        %822 = vperm.xlu0 %821, %v788
        %v823 = vpop.permute.xlu0 %822
        %v825 = vunpack.c.l.s4 269488144
        %v826 = vunpack.c.0.s8 %v825
        %v827 = vlaneseq
        %v828 = vshrl.u32 %v827, 7
        %v829 = vsub.s32 %v826, %v828
        %v830 = vrot.slane %v823, %v829
        %v832 = vmul.f32 %v787, %v830
        %834 = vrot.lane.b32.xlu0 %v832, 96
        %v835 = vpop.permute.xlu0 %834
        %v836 = vrot.slane %v835, 2
        %v837 = vsel %vm362, %v835, %v836
        %v839 = vadd.f32 %v820, %v837
        %840 = vset.pattern.permute.xlu0 24
        %841 = vperm.xlu0 %840, %v788
        %v842 = vpop.permute.xlu0 %841
        %v844 = vunpack.c.l.s4 269488144
        %v845 = vunpack.c.0.s8 %v844
        %v846 = vlaneseq
        %v847 = vshrl.u32 %v846, 7
        %v848 = vsub.s32 %v845, %v847
        %v849 = vrot.slane %v842, %v848
        %v851 = vmul.f32 %v787, %v849
        %853 = vrot.lane.b32.xlu0 %v851, 80
        %v854 = vpop.permute.xlu0 %853
        %v855 = vrot.slane %v854, 2
        %v856 = vsel %vm382, %v854, %v855
        %v858 = vadd.f32 %v839, %v856
        %859 = vset.pattern.permute.xlu0 31
        %860 = vperm.xlu0 %859, %v788
        %v861 = vpop.permute.xlu0 %860
        %v863 = vunpack.c.l.s4 269488144
        %v864 = vunpack.c.0.s8 %v863
        %v865 = vlaneseq
        %v866 = vshrl.u32 %v865, 7
        %v867 = vsub.s32 %v864, %v866
        %v868 = vrot.slane %v861, %v867
        %v870 = vmul.f32 %v787, %v868
        %872 = vrot.lane.b32.xlu0 %v870, 64
        %v873 = vpop.permute.xlu0 %872
        %v874 = vrot.slane %v873, 2
        %v875 = vsel %vm402, %v873, %v874
        %v877 = vadd.f32 %v858, %v875
        %878 = vset.pattern.permute.xlu0 38
        %879 = vperm.xlu0 %878, %v788
        %v880 = vpop.permute.xlu0 %879
        %v882 = vunpack.c.l.s4 269488144
        %v883 = vunpack.c.0.s8 %v882
        %v884 = vlaneseq
        %v885 = vshrl.u32 %v884, 7
        %v886 = vsub.s32 %v883, %v885
        %v887 = vrot.slane %v880, %v886
        %v889 = vmul.f32 %v787, %v887
        %891 = vrot.lane.b32.xlu0 %v889, 48
        %v892 = vpop.permute.xlu0 %891
        %v893 = vrot.slane %v892, 2
        %v894 = vsel %vm422, %v892, %v893
        %v896 = vadd.f32 %v877, %v894
        %897 = vset.pattern.permute.xlu0 45
        %898 = vperm.xlu0 %897, %v788
        %v899 = vpop.permute.xlu0 %898
        %v901 = vunpack.c.l.s4 269488144
        %v902 = vunpack.c.0.s8 %v901
        %v903 = vlaneseq
        %v904 = vshrl.u32 %v903, 7
        %v905 = vsub.s32 %v902, %v904
        %v906 = vrot.slane %v899, %v905
        %v908 = vmul.f32 %v787, %v906
        %910 = vrot.lane.b32.xlu0 %v908, 32
        %v911 = vpop.permute.xlu0 %910
        %v912 = vrot.slane %v911, 2
        %v913 = vsel %vm442, %v911, %v912
        %v915 = vadd.f32 %v896, %v913
        %917 = vrot.lane.b32.xlu0 %v915, 125
        %v918 = vpop.permute.xlu0 %917
        %v919 = vrot.slane %v918, 2
        %vm920 = vcmask 1022976
        %v921 = vsel %vm920, %v918, %v919
        %v923 = vadd.f32 %v786, %v921
        %924 = vset.pattern.permute.xlu0 4
        %925 = vperm.xlu0 %924, %v788
        %v926 = vpop.permute.xlu0 %925
        %v928 = vunpack.c.l.s4 269488144
        %v929 = vunpack.c.0.s8 %v928
        %v930 = vlaneseq
        %v931 = vshrl.u32 %v930, 7
        %v932 = vsub.s32 %v929, %v931
        %v933 = vrot.slane %v926, %v932
        %v935 = vmul.f32 %v787, %v933
        %936 = vset.pattern.permute.xlu0 11
        %937 = vperm.xlu0 %936, %v788
        %v938 = vpop.permute.xlu0 %937
        %v940 = vunpack.c.l.s4 269488144
        %v941 = vunpack.c.0.s8 %v940
        %v942 = vlaneseq
        %v943 = vshrl.u32 %v942, 7
        %v944 = vsub.s32 %v941, %v943
        %v945 = vrot.slane %v938, %v944
        %v947 = vmul.f32 %v787, %v945
        %949 = vrot.lane.b32.xlu0 %v947, 112
        %v950 = vpop.permute.xlu0 %949
        %v951 = vrot.slane %v950, 2
        %v952 = vsel %vm342, %v950, %v951
        %v954 = vadd.f32 %v935, %v952
        %955 = vset.pattern.permute.xlu0 18
        %956 = vperm.xlu0 %955, %v788
        %v957 = vpop.permute.xlu0 %956
        %v959 = vunpack.c.l.s4 269488144
        %v960 = vunpack.c.0.s8 %v959
        %v961 = vlaneseq
        %v962 = vshrl.u32 %v961, 7
        %v963 = vsub.s32 %v960, %v962
        %v964 = vrot.slane %v957, %v963
        %v966 = vmul.f32 %v787, %v964
        %968 = vrot.lane.b32.xlu0 %v966, 96
        %v969 = vpop.permute.xlu0 %968
        %v970 = vrot.slane %v969, 2
        %v971 = vsel %vm362, %v969, %v970
        %v973 = vadd.f32 %v954, %v971
        %974 = vset.pattern.permute.xlu0 25
        %975 = vperm.xlu0 %974, %v788
        %v976 = vpop.permute.xlu0 %975
        %v978 = vunpack.c.l.s4 269488144
        %v979 = vunpack.c.0.s8 %v978
        %v980 = vlaneseq
        %v981 = vshrl.u32 %v980, 7
        %v982 = vsub.s32 %v979, %v981
        %v983 = vrot.slane %v976, %v982
        %v985 = vmul.f32 %v787, %v983
        %987 = vrot.lane.b32.xlu0 %v985, 80
        %v988 = vpop.permute.xlu0 %987
        %v989 = vrot.slane %v988, 2
        %v990 = vsel %vm382, %v988, %v989
        %v992 = vadd.f32 %v973, %v990
        %993 = vset.pattern.permute.xlu0 32
        %994 = vperm.xlu0 %993, %v788
        %v995 = vpop.permute.xlu0 %994
        %v997 = vunpack.c.l.s4 269488144
        %v998 = vunpack.c.0.s8 %v997
        %v999 = vlaneseq
        %v1000 = vshrl.u32 %v999, 7
        %v1001 = vsub.s32 %v998, %v1000
        %v1002 = vrot.slane %v995, %v1001
        %v1004 = vmul.f32 %v787, %v1002
        %1006 = vrot.lane.b32.xlu0 %v1004, 64
        %v1007 = vpop.permute.xlu0 %1006
        %v1008 = vrot.slane %v1007, 2
        %v1009 = vsel %vm402, %v1007, %v1008
        %v1011 = vadd.f32 %v992, %v1009
        %1012 = vset.pattern.permute.xlu0 39
        %1013 = vperm.xlu0 %1012, %v788
        %v1014 = vpop.permute.xlu0 %1013
        %v1016 = vunpack.c.l.s4 269488144
        %v1017 = vunpack.c.0.s8 %v1016
        %v1018 = vlaneseq
        %v1019 = vshrl.u32 %v1018, 7
        %v1020 = vsub.s32 %v1017, %v1019
        %v1021 = vrot.slane %v1014, %v1020
        %v1023 = vmul.f32 %v787, %v1021
        %1025 = vrot.lane.b32.xlu0 %v1023, 48
        %v1026 = vpop.permute.xlu0 %1025
        %v1027 = vrot.slane %v1026, 2
        %v1028 = vsel %vm422, %v1026, %v1027
        %v1030 = vadd.f32 %v1011, %v1028
        %1031 = vset.pattern.permute.xlu0 46
        %1032 = vperm.xlu0 %1031, %v788
        %v1033 = vpop.permute.xlu0 %1032
        %v1035 = vunpack.c.l.s4 269488144
        %v1036 = vunpack.c.0.s8 %v1035
        %v1037 = vlaneseq
        %v1038 = vshrl.u32 %v1037, 7
        %v1039 = vsub.s32 %v1036, %v1038
        %v1040 = vrot.slane %v1033, %v1039
        %v1042 = vmul.f32 %v787, %v1040
        %1044 = vrot.lane.b32.xlu0 %v1042, 32
        %v1045 = vpop.permute.xlu0 %1044
        %v1046 = vrot.slane %v1045, 2
        %v1047 = vsel %vm442, %v1045, %v1046
        %v1049 = vadd.f32 %v1030, %v1047
        %v1051 = vlaneseq
        %v1052 = vshrl.u32 %v1051, 7
        %v1053 = vsub.s32 0, %v1052
        %v1054 = vrot.slane %v303, %v1053
        %v1055 = vlaneseq
        %v1056 = vshrl.u32 %v1055, 7
        %v1057 = vsub.s32 1, %v1056
        %v1058 = vrot.slane %v303, %v1057
        %v1059 = vcombine.low %v1054, %v1058
        %v1061 = vunpack.c.l.s4 1983009808
        %v1062 = vunpack.c.0.s8 %v1061
        %v1063 = vlaneseq
        %v1064 = vshrl.u32 %v1063, 7
        %v1065 = vsub.s32 %v1062, %v1064
        %v1066 = vrot.slane %v1059, %v1065
        %1067 = vrot.lane.b32.xlu0 %v1066, 4
        %v1068 = vpop.permute.xlu0 %1067
        %v1069 = vrot.slane %v1068, 6
        %vm1070 = vcmask 31744
        %v1071 = vsel %vm1070, %v1069, %v1068
        %v1073 = vmul.f32 %v1049, %v1071
        %1075 = vrot.lane.b32.xlu0 %v1073, 124
        %v1076 = vpop.permute.xlu0 %1075
        %v1077 = vrot.slane %v1076, 2
        %vm1078 = vcmask 1014784
        %v1079 = vsel %vm1078, %v1076, %v1077
        %v1081 = vadd.f32 %v923, %v1079
        %v1082 = vld [vmem:[#allocation2] sm:$0x3f]
        %v1083 = vld [vmem:[#allocation3] sm:$0x3]
        %1085 = vset.pattern.permute.xlu0 5
        %1086 = vperm.xlu0 %1085, %v1083
        %v1087 = vpop.permute.xlu0 %1086
        %v1089 = vunpack.c.l.s4 269488144
        %v1090 = vunpack.c.0.s8 %v1089
        %v1091 = vlaneseq
        %v1092 = vshrl.u32 %v1091, 7
        %v1093 = vsub.s32 %v1090, %v1092
        %v1094 = vrot.slane %v1087, %v1093
        %v1096 = vmul.f32 %v1082, %v1094
        %1097 = vset.pattern.permute.xlu0 12
        %1098 = vperm.xlu0 %1097, %v1083
        %v1099 = vpop.permute.xlu0 %1098
        %v1101 = vunpack.c.l.s4 269488144
        %v1102 = vunpack.c.0.s8 %v1101
        %v1103 = vlaneseq
        %v1104 = vshrl.u32 %v1103, 7
        %v1105 = vsub.s32 %v1102, %v1104
        %v1106 = vrot.slane %v1099, %v1105
        %v1108 = vmul.f32 %v1082, %v1106
        %1110 = vrot.lane.b32.xlu0 %v1108, 112
        %v1111 = vpop.permute.xlu0 %1110
        %v1112 = vrot.slane %v1111, 2
        %v1113 = vsel %vm342, %v1111, %v1112
        %v1115 = vadd.f32 %v1096, %v1113
        %1116 = vset.pattern.permute.xlu0 19
        %1117 = vperm.xlu0 %1116, %v1083
        %v1118 = vpop.permute.xlu0 %1117
        %v1120 = vunpack.c.l.s4 269488144
        %v1121 = vunpack.c.0.s8 %v1120
        %v1122 = vlaneseq
        %v1123 = vshrl.u32 %v1122, 7
        %v1124 = vsub.s32 %v1121, %v1123
        %v1125 = vrot.slane %v1118, %v1124
        %v1127 = vmul.f32 %v1082, %v1125
        %1129 = vrot.lane.b32.xlu0 %v1127, 96
        %v1130 = vpop.permute.xlu0 %1129
        %v1131 = vrot.slane %v1130, 2
        %v1132 = vsel %vm362, %v1130, %v1131
        %v1134 = vadd.f32 %v1115, %v1132
        %1135 = vset.pattern.permute.xlu0 26
        %1136 = vperm.xlu0 %1135, %v1083
        %v1137 = vpop.permute.xlu0 %1136
        %v1139 = vunpack.c.l.s4 269488144
        %v1140 = vunpack.c.0.s8 %v1139
        %v1141 = vlaneseq
        %v1142 = vshrl.u32 %v1141, 7
        %v1143 = vsub.s32 %v1140, %v1142
        %v1144 = vrot.slane %v1137, %v1143
        %v1146 = vmul.f32 %v1082, %v1144
        %1148 = vrot.lane.b32.xlu0 %v1146, 80
        %v1149 = vpop.permute.xlu0 %1148
        %v1150 = vrot.slane %v1149, 2
        %v1151 = vsel %vm382, %v1149, %v1150
        %v1153 = vadd.f32 %v1134, %v1151
        %1154 = vset.pattern.permute.xlu0 33
        %1155 = vperm.xlu0 %1154, %v1083
        %v1156 = vpop.permute.xlu0 %1155
        %v1158 = vunpack.c.l.s4 269488144
        %v1159 = vunpack.c.0.s8 %v1158
        %v1160 = vlaneseq
        %v1161 = vshrl.u32 %v1160, 7
        %v1162 = vsub.s32 %v1159, %v1161
        %v1163 = vrot.slane %v1156, %v1162
        %v1165 = vmul.f32 %v1082, %v1163
        %1167 = vrot.lane.b32.xlu0 %v1165, 64
        %v1168 = vpop.permute.xlu0 %1167
        %v1169 = vrot.slane %v1168, 2
        %v1170 = vsel %vm402, %v1168, %v1169
        %v1172 = vadd.f32 %v1153, %v1170
        %1173 = vset.pattern.permute.xlu0 40
        %1174 = vperm.xlu0 %1173, %v1083
        %v1175 = vpop.permute.xlu0 %1174
        %v1177 = vunpack.c.l.s4 269488144
        %v1178 = vunpack.c.0.s8 %v1177
        %v1179 = vlaneseq
        %v1180 = vshrl.u32 %v1179, 7
        %v1181 = vsub.s32 %v1178, %v1180
        %v1182 = vrot.slane %v1175, %v1181
        %v1184 = vmul.f32 %v1082, %v1182
        %1186 = vrot.lane.b32.xlu0 %v1184, 48
        %v1187 = vpop.permute.xlu0 %1186
        %v1188 = vrot.slane %v1187, 2
        %v1189 = vsel %vm422, %v1187, %v1188
        %v1191 = vadd.f32 %v1172, %v1189
        %1192 = vset.pattern.permute.xlu0 47
        %1193 = vperm.xlu0 %1192, %v1083
        %v1194 = vpop.permute.xlu0 %1193
        %v1196 = vunpack.c.l.s4 269488144
        %v1197 = vunpack.c.0.s8 %v1196
        %v1198 = vlaneseq
        %v1199 = vshrl.u32 %v1198, 7
        %v1200 = vsub.s32 %v1197, %v1199
        %v1201 = vrot.slane %v1194, %v1200
        %v1203 = vmul.f32 %v1082, %v1201
        %1205 = vrot.lane.b32.xlu0 %v1203, 32
        %v1206 = vpop.permute.xlu0 %1205
        %v1207 = vrot.slane %v1206, 2
        %v1208 = vsel %vm442, %v1206, %v1207
        %v1210 = vadd.f32 %v1191, %v1208
        %v1212 = vlaneseq
        %v1213 = vshrl.u32 %v1212, 7
        %v1214 = vsub.s32 0, %v1213
        %v1215 = vrot.slane %v306, %v1214
        %v1216 = vlaneseq
        %v1217 = vshrl.u32 %v1216, 7
        %v1218 = vsub.s32 1, %v1217
        %v1219 = vrot.slane %v306, %v1218
        %v1220 = vcombine.low %v1215, %v1219
        %v1222 = vunpack.c.l.s4 1983009808
        %v1223 = vunpack.c.0.s8 %v1222
        %v1224 = vlaneseq
        %v1225 = vshrl.u32 %v1224, 7
        %v1226 = vsub.s32 %v1223, %v1225
        %v1227 = vrot.slane %v1220, %v1226
        %1228 = vrot.lane.b32.xlu0 %v1227, 5
        %v1229 = vpop.permute.xlu0 %1228
        %v1230 = vrot.slane %v1229, 6
        %vm1231 = vcmask 39936
        %v1232 = vsel %vm1231, %v1230, %v1229
        %v1234 = vmul.f32 %v1210, %v1232
        %1236 = vrot.lane.b32.xlu0 %v1234, 123
        %v1237 = vpop.permute.xlu0 %1236
        %v1238 = vrot.slane %v1237, 2
        %vm1239 = vcmask 1006592
        %v1240 = vsel %vm1239, %v1237, %v1238
        %v1242 = vadd.f32 %v1081, %v1240
        %v1243 = vld [vmem:[#allocation2] sm:$0x3f]
        %v1244 = vld [vmem:[#allocation3] sm:$0x3]
        %1246 = vset.pattern.permute.xlu0 6
        %1247 = vperm.xlu0 %1246, %v1244
        %v1248 = vpop.permute.xlu0 %1247
        %v1250 = vunpack.c.l.s4 269488144
        %v1251 = vunpack.c.0.s8 %v1250
        %v1252 = vlaneseq
        %v1253 = vshrl.u32 %v1252, 7
        %v1254 = vsub.s32 %v1251, %v1253
        %v1255 = vrot.slane %v1248, %v1254
        %v1257 = vmul.f32 %v1243, %v1255
        %1258 = vset.pattern.permute.xlu0 13
        %1259 = vperm.xlu0 %1258, %v1244
        %v1260 = vpop.permute.xlu0 %1259
        %v1262 = vunpack.c.l.s4 269488144
        %v1263 = vunpack.c.0.s8 %v1262
        %v1264 = vlaneseq
        %v1265 = vshrl.u32 %v1264, 7
        %v1266 = vsub.s32 %v1263, %v1265
        %v1267 = vrot.slane %v1260, %v1266
        %v1269 = vmul.f32 %v1243, %v1267
        %1271 = vrot.lane.b32.xlu0 %v1269, 112
        %v1272 = vpop.permute.xlu0 %1271
        %v1273 = vrot.slane %v1272, 2
        %v1274 = vsel %vm342, %v1272, %v1273
        %v1276 = vadd.f32 %v1257, %v1274
        %1277 = vset.pattern.permute.xlu0 20
        %1278 = vperm.xlu0 %1277, %v1244
        %v1279 = vpop.permute.xlu0 %1278
        %v1281 = vunpack.c.l.s4 269488144
        %v1282 = vunpack.c.0.s8 %v1281
        %v1283 = vlaneseq
        %v1284 = vshrl.u32 %v1283, 7
        %v1285 = vsub.s32 %v1282, %v1284
        %v1286 = vrot.slane %v1279, %v1285
        %v1288 = vmul.f32 %v1243, %v1286
        %1290 = vrot.lane.b32.xlu0 %v1288, 96
        %v1291 = vpop.permute.xlu0 %1290
        %v1292 = vrot.slane %v1291, 2
        %v1293 = vsel %vm362, %v1291, %v1292
        %v1295 = vadd.f32 %v1276, %v1293
        %1296 = vset.pattern.permute.xlu0 27
        %1297 = vperm.xlu0 %1296, %v1244
        %v1298 = vpop.permute.xlu0 %1297
        %v1300 = vunpack.c.l.s4 269488144
        %v1301 = vunpack.c.0.s8 %v1300
        %v1302 = vlaneseq
        %v1303 = vshrl.u32 %v1302, 7
        %v1304 = vsub.s32 %v1301, %v1303
        %v1305 = vrot.slane %v1298, %v1304
        %v1307 = vmul.f32 %v1243, %v1305
        %1309 = vrot.lane.b32.xlu0 %v1307, 80
        %v1310 = vpop.permute.xlu0 %1309
        %v1311 = vrot.slane %v1310, 2
        %v1312 = vsel %vm382, %v1310, %v1311
        %v1314 = vadd.f32 %v1295, %v1312
        %1315 = vset.pattern.permute.xlu0 34
        %1316 = vperm.xlu0 %1315, %v1244
        %v1317 = vpop.permute.xlu0 %1316
        %v1319 = vunpack.c.l.s4 269488144
        %v1320 = vunpack.c.0.s8 %v1319
        %v1321 = vlaneseq
        %v1322 = vshrl.u32 %v1321, 7
        %v1323 = vsub.s32 %v1320, %v1322
        %v1324 = vrot.slane %v1317, %v1323
        %v1326 = vmul.f32 %v1243, %v1324
        %1328 = vrot.lane.b32.xlu0 %v1326, 64
        %v1329 = vpop.permute.xlu0 %1328
        %v1330 = vrot.slane %v1329, 2
        %v1331 = vsel %vm402, %v1329, %v1330
        %v1333 = vadd.f32 %v1314, %v1331
        %1334 = vset.pattern.permute.xlu0 41
        %1335 = vperm.xlu0 %1334, %v1244
        %v1336 = vpop.permute.xlu0 %1335
        %v1338 = vunpack.c.l.s4 269488144
        %v1339 = vunpack.c.0.s8 %v1338
        %v1340 = vlaneseq
        %v1341 = vshrl.u32 %v1340, 7
        %v1342 = vsub.s32 %v1339, %v1341
        %v1343 = vrot.slane %v1336, %v1342
        %v1345 = vmul.f32 %v1243, %v1343
        %1347 = vrot.lane.b32.xlu0 %v1345, 48
        %v1348 = vpop.permute.xlu0 %1347
        %v1349 = vrot.slane %v1348, 2
        %v1350 = vsel %vm422, %v1348, %v1349
        %v1352 = vadd.f32 %v1333, %v1350
        %1353 = vset.pattern.permute.xlu0 48
        %1354 = vperm.xlu0 %1353, %v1244
        %v1355 = vpop.permute.xlu0 %1354
        %v1357 = vunpack.c.l.s4 269488144
        %v1358 = vunpack.c.0.s8 %v1357
        %v1359 = vlaneseq
        %v1360 = vshrl.u32 %v1359, 7
        %v1361 = vsub.s32 %v1358, %v1360
        %v1362 = vrot.slane %v1355, %v1361
        %v1364 = vmul.f32 %v1243, %v1362
        %1366 = vrot.lane.b32.xlu0 %v1364, 32
        %v1367 = vpop.permute.xlu0 %1366
        %v1368 = vrot.slane %v1367, 2
        %v1369 = vsel %vm442, %v1367, %v1368
        %v1371 = vadd.f32 %v1352, %v1369
        %v1373 = vlaneseq
        %v1374 = vshrl.u32 %v1373, 7
        %v1375 = vsub.s32 0, %v1374
        %v1376 = vrot.slane %v309, %v1375
        %v1377 = vlaneseq
        %v1378 = vshrl.u32 %v1377, 7
        %v1379 = vsub.s32 1, %v1378
        %v1380 = vrot.slane %v309, %v1379
        %v1381 = vcombine.low %v1376, %v1380
        %v1383 = vunpack.c.l.s4 1983009808
        %v1384 = vunpack.c.0.s8 %v1383
        %v1385 = vlaneseq
        %v1386 = vshrl.u32 %v1385, 7
        %v1387 = vsub.s32 %v1384, %v1386
        %v1388 = vrot.slane %v1381, %v1387
        %1389 = vrot.lane.b32.xlu0 %v1388, 6
        %v1390 = vpop.permute.xlu0 %1389
        %v1391 = vrot.slane %v1390, 6
        %vm1392 = vcmask 48128
        %v1393 = vsel %vm1392, %v1391, %v1390
        %v1395 = vmul.f32 %v1371, %v1393
        %1397 = vrot.lane.b32.xlu0 %v1395, 122
        %v1398 = vpop.permute.xlu0 %1397
        %v1399 = vrot.slane %v1398, 2
        %vm1400 = vcmask 998400
        %v1401 = vsel %vm1400, %v1398, %v1399
        %v1403 = vadd.f32 %v1242, %v1401
        %v1406 = vunpack.c.l.s4 1983009808
        %v1407 = vunpack.c.0.s8 %v1406
        %v1408 = vlaneseq
        %v1409 = vshrl.u32 %v1408, 7
        %v1410 = vsub.s32 %v1407, %v1409
        %v1411 = vrot.slane %v1403, %v1410
        %v1412 = vcombine.high %v1411, %v1411
        %vm1415 = vcmask 1041408
        %v1416 = vsel %vm1415, %v1411, 0.0
        %v1417 = vrot.slane %v1416, 4
        %v1418 = vadd.f32 %v1416, %v1417
        %v1419 = vrot.slane %v1418, 2
        %v1420 = vadd.f32 %v1418, %v1419
        %v1421 = vrot.slane %v1420, 1
        %v1422 = vadd.f32 %v1420, %v1421
        %v1423 = vsel %vm1415, %v1412, 0.0
        %v1424 = vrot.slane %v1423, 4
        %v1425 = vadd.f32 %v1423, %v1424
        %v1426 = vrot.slane %v1425, 2
        %v1427 = vadd.f32 %v1425, %v1426
        %v1428 = vrot.slane %v1427, 1
        %v1429 = vadd.f32 %v1427, %v1428
        %v1430 = vxor.u32 %v1422, 2147483648
        %v1431 = vxor.u32 %v1429, 2147483648
        %v1432 = vmul.f32 %v1430, 1.442695
        %v1433 = vpow.pop %v1432
        %v1434 = vmul.f32 %v1431, 1.442695
        %v1435 = vpow.pop %v1434
        %v1436 = vadd.f32 %v1433, 1.0
        %v1437 = vadd.f32 %v1435, 1.0
        %v1438 = vrcp.pop %v1436
        %v1439 = vmul.f32 1.0, %v1438
        %v1440 = vrcp.pop %v1437
        %v1441 = vmul.f32 1.0, %v1440
        %v1442 = vld [vmem:[%s177] sm:$0xff]
        %v1444 = vcombine.high %v1442, %v1442
        %v1446 = vmul.f32 %v1439, %v1442
        %v1447 = vmul.f32 %v1441, %v1444
        %v1450 = vcombine.low %v1446, %v1447
        %1452 = vst [vmem:[%s199] sm:$0xff] %v1450
        %s1453 = sand.u32 %s97, 1
        %s1454 = scalar_lea.sflag [#allocation5], %s1453
        %s1455 = sand.u32 %s97, 1
        %s1456 = smul.addr %s1455, 8
        %s1457 = scalar_lea.vmem [#allocation8], %s1456
        // Predicated region
        $region41: #{tpu_custom_call.1} parent=31 // pred_check
          %p1458 = pneg %p107
        $region42: #{tpu_custom_call.1} parent=31 // pred_check_branch
          %1460 = sbr.rel (%p1458) target = $region44
        $region43: #{tpu_custom_call.1} parent=31 // pred_region
          %s1462 = ssub.s32 128, 128
          %1463 = vsyncadd %s1454, %s1462
          %s1464 = smul.addr %s21, 2
          %s1465 = smul.addr %s1464, 64
          %s1466 = scalar_lea.hbm %s3, %s1465
          %s1468 = sshll.u32 %s1457, 4
          %s1469 = int_to_ptr.vmem [resolvable:$true] %s1468
          %1471 = dma.vmem_to_hbm [thread:$0]  %s1469, 128, %s1466, %s1454
        $region44: #{tpu_custom_call.1} parent=31 // pred_fallthru
          _
      $region32: #{tpu_custom_call.1} parent=5 // pred_fallthru
        _
      %p1472 = scmp.le.s32.totalorder 2, %s16
      // Predicated region
      $region45: #{tpu_custom_call.1} parent=5 // pred_check
        %p1473 = pneg %p1472
      $region46: #{tpu_custom_call.1} parent=5 // pred_check_branch
        %1475 = sbr.rel (%p1473) target = $region48
      $region47: #{tpu_custom_call.1} parent=5 // pred_region
        %s1476 = ssub.s32 %s16, 2
        // Predicated region
        $region49: #{tpu_custom_call.1} parent=47 // pred_check
          %p1477 = pneg %p113
        $region50: #{tpu_custom_call.1} parent=47 // pred_check_branch
          %1479 = sbr.rel (%p1477) target = $region52
        $region51: #{tpu_custom_call.1} parent=47 // pred_region
          %s1480 = sand.u32 %s98, 1
          %s1481 = scalar_lea.sflag [#allocation5], %s1480
          %s1482 = sand.u32 %s98, 1
          %s1483 = smul.addr %s1482, 8
          %s1484 = scalar_lea.vmem [#allocation8], %s1483
          %1485 = dma.done %s1481, 128
        $region52: #{tpu_custom_call.1} parent=47 // pred_fallthru
          _
      $region48: #{tpu_custom_call.1} parent=5 // pred_fallthru
        _
    $region6: #{tpu_custom_call.1} parent=1 // loop_footer
      %s20 = sadd.s32 1, %s16
    $region7: #{tpu_custom_call.1} parent=1 // loop_footer_branch
      %15 = sbr.rel target = $region3
    $region8: #{tpu_custom_call.1} parent=1 // loop_exit
      _
    %1486 = vsyncpa [#allocation4], 1
    %s1487 = scalar_lea.sflag [#allocation4], 1
    %1488 = vsyncpa %s1487, 1
    %1489 = vsyncpa [#allocation7], 1
    %s1490 = scalar_lea.sflag [#allocation7], 1
    %1491 = vsyncpa %s1490, 1
    %1492 = vsyncpa [#allocation5], 1
    %s1493 = scalar_lea.sflag [#allocation5], 1
    %1494 = vsyncpa %s1493, 1

</llo_original>
